<compile_context>
chip_gen: v6e
topology: v6e:2x2x1
jax: 0.10.0
libtpu: 0.0.40
codegen_flags: <defaults>
</compile_context>

<pallas_src>
import functools

import jax
import jax.numpy as jnp
from jax import lax
from jax.experimental import pallas as pl
from jax.experimental.pallas import tpu as pltpu


_B_TILE_MAX = 512   # max batch rows per grid step (multiple of 8)
_LANE = 128         # TPU lane width / padded tail-layer width


def _round_up(n: int, m: int) -> int:
    return ((n + m - 1) // m) * m


# ----------------------------- Pallas kernel ------------------------------ #

def _fused_policy_kernel(x_ref, wc_ref, bc_ref, w1_ref, b1_ref,
                         w2_ref, b2_ref, w3_ref, b3_ref, o_ref):
    """conv(as dense matmul)+ReLU -> Linear+tanh -> Linear+tanh -> Linear.

    x_ref : (Bt, C*H*W)   f32   raw NCHW input, flattened
    wc_ref: (C*H*W, 1024) bf16  conv folded to a dense matrix, columns in
                                PyTorch flatten order (c*64 + h*8 + w)
    bc_ref: (1, 1024)     f32   conv bias broadcast per output column
    w1_ref: (1024, 128)   bf16 ; b1_ref: (1, 128) f32
    w2_ref: (128, 128)    bf16 (cols >= 64 are zero) ; b2_ref: (1, 128) f32
    w3_ref: (128, 128)    bf16 (rows >= 64 / cols >= n_act zero) ; b3_ref f32
    o_ref : (Bt, 128)     f32   logits, padded to 128 lanes
    """
    xb = x_ref[...].astype(jnp.bfloat16)

    # Conv2d + bias + ReLU, expressed as one lane-dense matmul.
    conv = jnp.dot(xb, wc_ref[...], preferred_element_type=jnp.float32)
    h = jnp.maximum(conv + bc_ref[...], 0.0).astype(jnp.bfloat16)    # (Bt,1024)

    # fc_hidden: Linear(1024,128) -> tanh -> Linear(128,64) -> tanh -> Linear.
    h = jnp.tanh(jnp.dot(h, w1_ref[...], preferred_element_type=jnp.float32)
                 + b1_ref[...]).astype(jnp.bfloat16)                 # (Bt,128)
    h = jnp.tanh(jnp.dot(h, w2_ref[...], preferred_element_type=jnp.float32)
                 + b2_ref[...]).astype(jnp.bfloat16)                 # (Bt,128)
    o_ref[...] = (jnp.dot(h, w3_ref[...], preferred_element_type=jnp.float32)
                  + b3_ref[...])


# -------------------- one-time parameter preparation ----------------------- #

def _conv_as_dense_matrix(wc, h_in, w_in):
    """Unroll Conv2d(C->F, 3x3, stride 1, valid) + PyTorch NCHW flatten into a
    dense (C*H*W, F*Ho*Wo) matrix.  Column j = f*Ho*Wo + h*Wo + w; row
    i = c*H*W + (h+kh)*W + (w+kw) carries wc[f, c, kh, kw]."""
    f_out, c_in, k, _ = wc.shape
    ho, wo = h_in - k + 1, w_in - k + 1
    shape = (c_in, f_out, k, k, ho, wo)
    c = jnp.arange(c_in).reshape(c_in, 1, 1, 1, 1, 1)
    f = jnp.arange(f_out).reshape(1, f_out, 1, 1, 1, 1)
    kh = jnp.arange(k).reshape(1, 1, k, 1, 1, 1)
    kw = jnp.arange(k).reshape(1, 1, 1, k, 1, 1)
    hh = jnp.arange(ho).reshape(1, 1, 1, 1, ho, 1)
    ww = jnp.arange(wo).reshape(1, 1, 1, 1, 1, wo)
    rows = jnp.broadcast_to(c * (h_in * w_in) + (hh + kh) * w_in + (ww + kw),
                            shape)
    cols = jnp.broadcast_to(f * (ho * wo) + hh * wo + ww, shape)
    vals = jnp.broadcast_to(wc[f, c, kh, kw], shape)
    dense = jnp.zeros((c_in * h_in * w_in, f_out * ho * wo), jnp.float32)
    return dense.at[rows.ravel(), cols.ravel()].set(vals.ravel())


def prepare_params(params, h_in=10, w_in=10):
    """One-time conversion of PyTorch-layout params into kernel-ready arrays:
    conv folded to a dense matrix, bf16 weights, 128-lane padded tail."""
    k = params["wc"].shape[2]
    ho, wo = h_in - k + 1, w_in - k + 1
    n_act = params["w3"].shape[1]
    h2 = params["w2"].shape[1]                                   # 64

    wconv = _conv_as_dense_matrix(params["wc"], h_in, w_in)      # (C*H*W,1024)
    bconv = jnp.repeat(params["bc"], ho * wo)[None, :]           # (1, 1024)

    w2p = jnp.zeros((params["w2"].shape[0], _LANE), jnp.float32)
    w2p = w2p.at[:, :h2].set(params["w2"])
    b2p = jnp.zeros((1, _LANE), jnp.float32).at[:, :h2].set(params["b2"])
    w3p = jnp.zeros((_LANE, _LANE), jnp.float32).at[:h2, :n_act].set(params["w3"])
    b3p = jnp.zeros((1, _LANE), jnp.float32).at[:, :n_act].set(params["b3"])

    return {
        "wconv": wconv.astype(jnp.bfloat16),
        "bconv": bconv.astype(jnp.float32),
        "w1": params["w1"].astype(jnp.bfloat16),
        "b1": params["b1"][None, :].astype(jnp.float32),
        "w2": w2p.astype(jnp.bfloat16),
        "b2": b2p,
        "w3": w3p.astype(jnp.bfloat16),
        "b3": b3p,
    }


# ------------------------------ JAX wrapper -------------------------------- #

@functools.partial(jax.jit, static_argnames=("n_actions",))
def minatar_policy_forward(x_nchw, kp, *, n_actions):
    b, c, hh, ww = x_nchw.shape
    in_dim = c * hh * ww

    # Raw NCHW flatten: a free metadata reshape (no transpose needed -- the
    # folded conv matrix consumes (c, h, w)-ordered columns directly).
    x_flat = x_nchw.reshape(b, in_dim)

    # Batch tiling: bounded VMEM + double-buffered input/output DMA.
    if b <= _B_TILE_MAX:
        b_tile = _round_up(max(b, 1), 8)
        b_pad = b_tile
    else:
        b_tile = _B_TILE_MAX
        b_pad = _round_up(b, b_tile)
    if b_pad != b:
        x_flat = jnp.pad(x_flat, ((0, b_pad - b), (0, 0)))

    out_pad = kp["w3"].shape[1]                  # 128 (lane-dense output)

    def resident(arr):                           # weights stay VMEM-resident
        return pl.BlockSpec(arr.shape, lambda i: (0, 0))

    out = pl.pallas_call(
        _fused_policy_kernel,
        out_shape=jax.ShapeDtypeStruct((b_pad, out_pad), jnp.float32),
        grid=(b_pad // b_tile,),
        in_specs=[
            pl.BlockSpec((b_tile, in_dim), lambda i: (i, 0)),
            resident(kp["wconv"]), resident(kp["bconv"]),
            resident(kp["w1"]), resident(kp["b1"]),
            resident(kp["w2"]), resident(kp["b2"]),
            resident(kp["w3"]), resident(kp["b3"]),
        ],
        out_specs=pl.BlockSpec((b_tile, out_pad), lambda i: (i, 0)),
        compiler_params=pltpu.CompilerParams(
            dimension_semantics=("parallel",),       # 2 TCs on v7x
            vmem_limit_bytes=32 * 1024 * 1024,       # sized for v7x budget
        ),
    )(x_flat, kp["wconv"], kp["bconv"], kp["w1"], kp["b1"],
      kp["w2"], kp["b2"], kp["w3"], kp["b3"])

    return out[:b, :n_actions]


# --------------------------- reference / demo ------------------------------ #

def init_params(key, c_in, n_actions):
    """Deterministic synthetic params (shapes match the PyTorch module)."""
    k = jax.random.split(key, 5)
    p = {}
    p["wc"] = jax.random.normal(k[0], (16, c_in, 3, 3), jnp.float32) * 0.1
    p["bc"] = jax.random.normal(k[1], (16,), jnp.float32) * 0.01
    p["w1"] = jax.random.normal(k[2], (1024, 128), jnp.float32) * (2.0 / 1024) ** 0.5
    p["b1"] = jnp.zeros((128,), jnp.float32)
    p["w2"] = jax.random.normal(k[3], (128, 64), jnp.float32) * (2.0 / 128) ** 0.5
    p["b2"] = jnp.zeros((64,), jnp.float32)
    p["w3"] = jax.random.normal(k[4], (64, n_actions), jnp.float32) * 0.01
    p["b3"] = jnp.zeros((n_actions,), jnp.float32)
    return p


def _reference_forward(x, params):
    conv = lax.conv_general_dilated(
        x, params["wc"], window_strides=(1, 1), padding="VALID",
        dimension_numbers=("NCHW", "OIHW", "NCHW"))
    conv = jnp.maximum(conv + params["bc"][None, :, None, None], 0.0)
    flat = conv.reshape(x.shape[0], -1)              # PyTorch NCHW flatten
    h1 = jnp.tanh(flat @ params["w1"] + params["b1"])
    h2 = jnp.tanh(h1 @ params["w2"] + params["b2"])
    return h2 @ params["w3"] + params["b3"]


if __name__ == "__main__":
    key = jax.random.PRNGKey(0)
    k_x, k_p = jax.random.split(key)

    B, C_IN, HW, N_ACT = 2, 4, 10, 6        # MinAtar-style obs: (C, 10, 10)
    x = jax.random.uniform(k_x, (B, C_IN, HW, HW), jnp.float32)
    params = init_params(k_p, C_IN, N_ACT)

    kparams = prepare_params(params, h_in=HW, w_in=HW)   # one-time, outside jit
    logits = minatar_policy_forward(x, kparams, n_actions=N_ACT)
    jax.block_until_ready(logits)

    assert logits.shape == (B, N_ACT) and logits.dtype == jnp.float32
    ref = _reference_forward(x, params)
    max_err = float(jnp.max(jnp.abs(logits - ref)))
    assert max_err < 2e-2, f"mismatch vs f32 reference: {max_err}"
    print("KERNEL_OK")
</pallas_src>

<mosaic_0001>
module attributes {stable_mosaic.version = 11 : i64} {
  func.func @_fused_policy_kernel(%arg0: i32, %arg1: memref<8x400xf32, #tpu.memory_space<vmem>>, %arg2: memref<400x1024xbf16, #tpu.memory_space<vmem>>, %arg3: memref<1x1024xf32, #tpu.memory_space<vmem>>, %arg4: memref<1024x128xbf16, #tpu.memory_space<vmem>>, %arg5: memref<1x128xf32, #tpu.memory_space<vmem>>, %arg6: memref<128x128xbf16, #tpu.memory_space<vmem>>, %arg7: memref<1x128xf32, #tpu.memory_space<vmem>>, %arg8: memref<128x128xbf16, #tpu.memory_space<vmem>>, %arg9: memref<1x128xf32, #tpu.memory_space<vmem>>, %arg10: memref<8x128xf32, #tpu.memory_space<vmem>>) attributes {dimension_semantics = [#tpu.dimension_semantics<parallel>], iteration_bounds = array<i64: 1>, scalar_prefetch = 0 : i64, scratch_operands = 0 : i64, tpu.core_type = #tpu.core_type<tc>, window_params = [{transform_indices = @transform_0, window_bounds = array<i64: 8, 400>}, {pipeline_mode = #tpu.pipeline_mode<synchronous>, transform_indices = @transform_1, window_bounds = array<i64: 400, 1024>}, {pipeline_mode = #tpu.pipeline_mode<synchronous>, transform_indices = @transform_2, window_bounds = array<i64: 1, 1024>}, {pipeline_mode = #tpu.pipeline_mode<synchronous>, transform_indices = @transform_3, window_bounds = array<i64: 1024, 128>}, {pipeline_mode = #tpu.pipeline_mode<synchronous>, transform_indices = @transform_4, window_bounds = array<i64: 1, 128>}, {pipeline_mode = #tpu.pipeline_mode<synchronous>, transform_indices = @transform_5, window_bounds = array<i64: 128, 128>}, {pipeline_mode = #tpu.pipeline_mode<synchronous>, transform_indices = @transform_6, window_bounds = array<i64: 1, 128>}, {pipeline_mode = #tpu.pipeline_mode<synchronous>, transform_indices = @transform_7, window_bounds = array<i64: 128, 128>}, {pipeline_mode = #tpu.pipeline_mode<synchronous>, transform_indices = @transform_8, window_bounds = array<i64: 1, 128>}, {transform_indices = @transform_9, window_bounds = array<i64: 8, 128>}]} {
    %c0 = arith.constant 0 : index
    %c0_0 = arith.constant 0 : index
    %0 = vector.load %arg1[%c0, %c0_0] : memref<8x400xf32, #tpu.memory_space<vmem>>, vector<8x400xf32>
    %1 = arith.truncf %0 : vector<8x400xf32> to vector<8x400xbf16>
    %c0_1 = arith.constant 0 : index
    %c0_2 = arith.constant 0 : index
    %2 = vector.load %arg2[%c0_1, %c0_2] : memref<400x1024xbf16, #tpu.memory_space<vmem>>, vector<400x1024xbf16>
    %cst = arith.constant dense<0.000000e+00> : vector<8x1024xf32>
    %3 = tpu.matmul %1, %2, %cst {dimension_numbers = #tpu.dot_dimension_numbers<[1], [0], [0], [1], [0, 0, 1, 1], [], []>} : vector<8x400xbf16>, vector<400x1024xbf16>, vector<8x1024xf32> -> vector<8x1024xf32>
    %c0_3 = arith.constant 0 : index
    %c0_4 = arith.constant 0 : index
    %4 = vector.load %arg3[%c0_3, %c0_4] : memref<1x1024xf32, #tpu.memory_space<vmem>>, vector<1x1024xf32>
    %5 = vector.broadcast %4 : vector<1x1024xf32> to vector<8x1024xf32>
    %6 = arith.addf %3, %5 : vector<8x1024xf32>
    %cst_5 = arith.constant 0.000000e+00 : f32
    %7 = vector.broadcast %cst_5 : f32 to vector<8x1024xf32>
    %8 = arith.maximumf %6, %7 : vector<8x1024xf32>
    %9 = arith.truncf %8 : vector<8x1024xf32> to vector<8x1024xbf16>
    %c0_6 = arith.constant 0 : index
    %c0_7 = arith.constant 0 : index
    %10 = vector.load %arg4[%c0_6, %c0_7] : memref<1024x128xbf16, #tpu.memory_space<vmem>>, vector<1024x128xbf16>
    %cst_8 = arith.constant dense<0.000000e+00> : vector<8x128xf32>
    %11 = tpu.matmul %9, %10, %cst_8 {dimension_numbers = #tpu.dot_dimension_numbers<[1], [0], [0], [1], [0, 0, 1, 1], [], []>} : vector<8x1024xbf16>, vector<1024x128xbf16>, vector<8x128xf32> -> vector<8x128xf32>
    %c0_9 = arith.constant 0 : index
    %c0_10 = arith.constant 0 : index
    %12 = vector.load %arg5[%c0_9, %c0_10] : memref<1x128xf32, #tpu.memory_space<vmem>>, vector<1x128xf32>
    %13 = vector.broadcast %12 : vector<1x128xf32> to vector<8x128xf32>
    %14 = arith.addf %11, %13 : vector<8x128xf32>
    %15 = math.tanh %14 : vector<8x128xf32>
    %16 = arith.truncf %15 : vector<8x128xf32> to vector<8x128xbf16>
    %c0_11 = arith.constant 0 : index
    %c0_12 = arith.constant 0 : index
    %17 = vector.load %arg6[%c0_11, %c0_12] : memref<128x128xbf16, #tpu.memory_space<vmem>>, vector<128x128xbf16>
    %cst_13 = arith.constant dense<0.000000e+00> : vector<8x128xf32>
    %18 = tpu.matmul %16, %17, %cst_13 {dimension_numbers = #tpu.dot_dimension_numbers<[1], [0], [0], [1], [0, 0, 1, 1], [], []>} : vector<8x128xbf16>, vector<128x128xbf16>, vector<8x128xf32> -> vector<8x128xf32>
    %c0_14 = arith.constant 0 : index
    %c0_15 = arith.constant 0 : index
    %19 = vector.load %arg7[%c0_14, %c0_15] : memref<1x128xf32, #tpu.memory_space<vmem>>, vector<1x128xf32>
    %20 = vector.broadcast %19 : vector<1x128xf32> to vector<8x128xf32>
    %21 = arith.addf %18, %20 : vector<8x128xf32>
    %22 = math.tanh %21 : vector<8x128xf32>
    %23 = arith.truncf %22 : vector<8x128xf32> to vector<8x128xbf16>
    %c0_16 = arith.constant 0 : index
    %c0_17 = arith.constant 0 : index
    %24 = vector.load %arg8[%c0_16, %c0_17] : memref<128x128xbf16, #tpu.memory_space<vmem>>, vector<128x128xbf16>
    %cst_18 = arith.constant dense<0.000000e+00> : vector<8x128xf32>
    %25 = tpu.matmul %23, %24, %cst_18 {dimension_numbers = #tpu.dot_dimension_numbers<[1], [0], [0], [1], [0, 0, 1, 1], [], []>} : vector<8x128xbf16>, vector<128x128xbf16>, vector<8x128xf32> -> vector<8x128xf32>
    %c0_19 = arith.constant 0 : index
    %c0_20 = arith.constant 0 : index
    %26 = vector.load %arg9[%c0_19, %c0_20] : memref<1x128xf32, #tpu.memory_space<vmem>>, vector<1x128xf32>
    %27 = vector.broadcast %26 : vector<1x128xf32> to vector<8x128xf32>
    %28 = arith.addf %25, %27 : vector<8x128xf32>
    %c0_21 = arith.constant 0 : index
    %c0_22 = arith.constant 0 : index
    %29 = vector.load %arg10[%c0_21, %c0_22] : memref<8x128xf32, #tpu.memory_space<vmem>>, vector<8x128xf32>
    tpu.vector_store %arg10[%c0_21, %c0_22], %28 {strides = array<i32>} : memref<8x128xf32, #tpu.memory_space<vmem>>, vector<8x128xf32>,
    return
  }
  func.func @transform_0(%arg0: i32) -> (i32, i32) {
    %c0_i32 = arith.constant 0 : i32
    %c0_i32_0 = arith.constant 0 : i32
    return %arg0, %c0_i32 : i32, i32
  }
  func.func @transform_1(%arg0: i32) -> (i32, i32) {
    %c0_i32 = arith.constant 0 : i32
    %c0_i32_0 = arith.constant 0 : i32
    %c0_i32_1 = arith.constant 0 : i32
    return %c0_i32, %c0_i32_0 : i32, i32
  }
  func.func @transform_2(%arg0: i32) -> (i32, i32) {
    %c0_i32 = arith.constant 0 : i32
    %c0_i32_0 = arith.constant 0 : i32
    %c0_i32_1 = arith.constant 0 : i32
    return %c0_i32, %c0_i32_0 : i32, i32
  }
  func.func @transform_3(%arg0: i32) -> (i32, i32) {
    %c0_i32 = arith.constant 0 : i32
    %c0_i32_0 = arith.constant 0 : i32
    %c0_i32_1 = arith.constant 0 : i32
    return %c0_i32, %c0_i32_0 : i32, i32
  }
  func.func @transform_4(%arg0: i32) -> (i32, i32) {
    %c0_i32 = arith.constant 0 : i32
    %c0_i32_0 = arith.constant 0 : i32
    %c0_i32_1 = arith.constant 0 : i32
    return %c0_i32, %c0_i32_0 : i32, i32
  }
  func.func @transform_5(%arg0: i32) -> (i32, i32) {
    %c0_i32 = arith.constant 0 : i32
    %c0_i32_0 = arith.constant 0 : i32
    %c0_i32_1 = arith.constant 0 : i32
    return %c0_i32, %c0_i32_0 : i32, i32
  }
  func.func @transform_6(%arg0: i32) -> (i32, i32) {
    %c0_i32 = arith.constant 0 : i32
    %c0_i32_0 = arith.constant 0 : i32
    %c0_i32_1 = arith.constant 0 : i32
    return %c0_i32, %c0_i32_0 : i32, i32
  }
  func.func @transform_7(%arg0: i32) -> (i32, i32) {
    %c0_i32 = arith.constant 0 : i32
    %c0_i32_0 = arith.constant 0 : i32
    %c0_i32_1 = arith.constant 0 : i32
    return %c0_i32, %c0_i32_0 : i32, i32
  }
  func.func @transform_8(%arg0: i32) -> (i32, i32) {
    %c0_i32 = arith.constant 0 : i32
    %c0_i32_0 = arith.constant 0 : i32
    %c0_i32_1 = arith.constant 0 : i32
    return %c0_i32, %c0_i32_0 : i32, i32
  }
  func.func @transform_9(%arg0: i32) -> (i32, i32) {
    %c0_i32 = arith.constant 0 : i32
    %c0_i32_0 = arith.constant 0 : i32
    return %arg0, %c0_i32 : i32, i32
  }
}

</mosaic_0001>

<llo_original>
// kernel: minatar_policy_forward.1
$region0: #{minatar_policy_forward.1}
  #allocation0 [shape = 'u32[]', space=smem, size = 0x4, offset = 0x4, fixed_abs, tag = 'smem constant byte address 0x4 - core index']
  #allocation1 [shape = 'u32[144,128]{1,0:T(1,128)}', space=vmem, size = 0x12000, scoped, tag = 'internal scratch']
  %s0 = inlined_call_operand.vmem [shape: f32[8,400], index: 0, kind: input, shape index: {}]
  %s1 = inlined_call_operand.hbm [shape: bf16[400,1024], index: 1, kind: input, shape index: {}]
  %s2 = inlined_call_operand.vmem [shape: f32[1,1024], index: 2, kind: input, shape index: {}]
  %s3 = inlined_call_operand.hbm [shape: bf16[1024,128], index: 3, kind: input, shape index: {}]
  %s4 = inlined_call_operand.vmem [shape: f32[1,128], index: 4, kind: input, shape index: {}]
  %s5 = inlined_call_operand.vmem [shape: bf16[128,128], index: 5, kind: input, shape index: {}]
  %s6 = inlined_call_operand.vmem [shape: f32[1,128], index: 6, kind: input, shape index: {}]
  %s7 = inlined_call_operand.vmem [shape: bf16[128,128], index: 7, kind: input, shape index: {}]
  %s8 = inlined_call_operand.vmem [shape: f32[1,128], index: 8, kind: input, shape index: {}]
  %s9 = inlined_call_operand.vmem [shape: f32[8,128], index: 9, kind: output, shape index: {}]
  %s10 = sld [smem:[#allocation0]]
  $region54: #{minatar_policy_forward.1} parent=0
    _
  %s12 = ssub.s32 1, %s10
  %s13 = scalar_select 0, %s12, %s10
  $region1: #{minatar_policy_forward.1} parent=0
    #allocation2 [shape = 'u8[819200]{0}', space=vmem, size = 0xc8000, scoped, tag = 'input window, operand 1, single buffered']
    #allocation3 [shape = 's32[1]{0}', space=sflag, size = 0x4, scoped, tag = 'scoped memory for minatar_policy_forward.1']
    #allocation4 [shape = 'u8[262144]{0}', space=vmem, size = 0x40000, scoped, tag = 'input window, operand 3, single buffered']
    #allocation5 [shape = 's32[1]{0}', space=sflag, size = 0x4, scoped, tag = 'scoped memory for minatar_policy_forward.1']
    %14 = vsyncpa [#allocation3], 0
    %15 = vsyncpa [#allocation5], 0
    // Predicated region
    $region2: #{minatar_policy_forward.1} parent=1 // pred_check
      _
    $region3: #{minatar_policy_forward.1} parent=1 // pred_check_branch
      %17 = sbr.rel (0) target = $region5
    $region4: #{minatar_policy_forward.1} parent=1 // pred_region
      _
    $region5: #{minatar_policy_forward.1} parent=1 // pred_fallthru
      _
    // Predicated region
    $region6: #{minatar_policy_forward.1} parent=1 // pred_check
      _
    $region7: #{minatar_policy_forward.1} parent=1 // pred_check_branch
      %19 = sbr.rel (0) target = $region9
    $region8: #{minatar_policy_forward.1} parent=1 // pred_region
      %s21 = ssub.s32 25600, 25600
      %22 = vsyncadd [#allocation3], %s21
      %s23 = sshll.u32 [#allocation2], 4
      %s24 = int_to_ptr.vmem [resolvable:$true] %s23
      %29 = dma.hbm_to_vmem [thread:$0]  %s1, 25600, %s24, [#allocation3], 512, 512, 32
    $region9: #{minatar_policy_forward.1} parent=1 // pred_fallthru
      _
    // Predicated region
    $region10: #{minatar_policy_forward.1} parent=1 // pred_check
      _
    $region11: #{minatar_policy_forward.1} parent=1 // pred_check_branch
      %31 = sbr.rel (0) target = $region13
    $region12: #{minatar_policy_forward.1} parent=1 // pred_region
      _
    $region13: #{minatar_policy_forward.1} parent=1 // pred_fallthru
      _
    // Predicated region
    $region14: #{minatar_policy_forward.1} parent=1 // pred_check
      _
    $region15: #{minatar_policy_forward.1} parent=1 // pred_check_branch
      %33 = sbr.rel (0) target = $region17
    $region16: #{minatar_policy_forward.1} parent=1 // pred_region
      %s35 = ssub.s32 8192, 8192
      %36 = vsyncadd [#allocation5], %s35
      %s37 = sshll.u32 [#allocation4], 4
      %s38 = int_to_ptr.vmem [resolvable:$true] %s37
      %43 = dma.hbm_to_vmem [thread:$0]  %s3, 8192, %s38, [#allocation5], 64, 64, 4
    $region17: #{minatar_policy_forward.1} parent=1 // pred_fallthru
      _
    // Predicated region
    $region18: #{minatar_policy_forward.1} parent=1 // pred_check
      _
    $region19: #{minatar_policy_forward.1} parent=1 // pred_check_branch
      %45 = sbr.rel (0) target = $region21
    $region20: #{minatar_policy_forward.1} parent=1 // pred_region
      _
    $region21: #{minatar_policy_forward.1} parent=1 // pred_fallthru
      _
    // Predicated region
    $region22: #{minatar_policy_forward.1} parent=1 // pred_check
      _
    $region23: #{minatar_policy_forward.1} parent=1 // pred_check_branch
      %47 = sbr.rel (0) target = $region25
    $region24: #{minatar_policy_forward.1} parent=1 // pred_region
      _
    $region25: #{minatar_policy_forward.1} parent=1 // pred_fallthru
      _
    // Predicated region
    $region26: #{minatar_policy_forward.1} parent=1 // pred_check
      _
    $region27: #{minatar_policy_forward.1} parent=1 // pred_check_branch
      %49 = sbr.rel (0) target = $region29
    $region28: #{minatar_policy_forward.1} parent=1 // pred_region
      _
    $region29: #{minatar_policy_forward.1} parent=1 // pred_fallthru
      _
    // Predicated region
    $region30: #{minatar_policy_forward.1} parent=1 // pred_check
      _
    $region31: #{minatar_policy_forward.1} parent=1 // pred_check_branch
      %51 = sbr.rel (0) target = $region33
    $region32: #{minatar_policy_forward.1} parent=1 // pred_region
      _
    $region33: #{minatar_policy_forward.1} parent=1 // pred_fallthru
      _
    // Predicated region
    $region34: #{minatar_policy_forward.1} parent=1 // pred_check
      _
    $region35: #{minatar_policy_forward.1} parent=1 // pred_check_branch
      %53 = sbr.rel (0) target = $region37
    $region36: #{minatar_policy_forward.1} parent=1 // pred_region
      _
    $region37: #{minatar_policy_forward.1} parent=1 // pred_fallthru
      _
    // Predicated region
    $region38: #{minatar_policy_forward.1} parent=1 // pred_check
      _
    $region39: #{minatar_policy_forward.1} parent=1 // pred_check_branch
      %55 = sbr.rel (0) target = $region41
    $region40: #{minatar_policy_forward.1} parent=1 // pred_region
      %56 = dma.done [#allocation3], 25600
    $region41: #{minatar_policy_forward.1} parent=1 // pred_fallthru
      _
    // Predicated region
    $region42: #{minatar_policy_forward.1} parent=1 // pred_check
      _
    $region43: #{minatar_policy_forward.1} parent=1 // pred_check_branch
      %58 = sbr.rel (0) target = $region45
    $region44: #{minatar_policy_forward.1} parent=1 // pred_region
      %59 = dma.done [#allocation5], 8192
    $region45: #{minatar_policy_forward.1} parent=1 // pred_fallthru
      _
    %v61 = vld [vmem:[%s0] sm:$0xff]
    %v62 = vld [vmem:[%s0 + $0x8] sm:$0xff]
    %v63 = vld [vmem:[%s0 + $0x10] sm:$0xff]
    %v64 = vld [vmem:[%s0 + $0x18] sm:$0xff]
    %v65 = vpack.c.bf16 %v61, %v61
    %v66 = vpack.c.bf16 %v62, %v62
    %v67 = vpack.c.bf16 %v63, %v63
    %v68 = vpack.c.bf16 %v64, %v64
    %v69 = vld [vmem:[#allocation2] sm:$0xff]
    %v70 = vld [vmem:[#allocation2 + $0x8] sm:$0xff]
    %v71 = vld [vmem:[#allocation2 + $0x10] sm:$0xff]
    %v72 = vld [vmem:[#allocation2 + $0x18] sm:$0xff]
    %v73 = vld [vmem:[#allocation2 + $0x20] sm:$0xff]
    %v74 = vld [vmem:[#allocation2 + $0x28] sm:$0xff]
    %v75 = vld [vmem:[#allocation2 + $0x30] sm:$0xff]
    %v76 = vld [vmem:[#allocation2 + $0x38] sm:$0xff]
    %v77 = vld [vmem:[#allocation2 + $0x40] sm:$0xff]
    %v78 = vld [vmem:[#allocation2 + $0x48] sm:$0xff]
    %v79 = vld [vmem:[#allocation2 + $0x50] sm:$0xff]
    %v80 = vld [vmem:[#allocation2 + $0x58] sm:$0xff]
    %v81 = vld [vmem:[#allocation2 + $0x60] sm:$0xff]
    %v82 = vld [vmem:[#allocation2 + $0x68] sm:$0xff]
    %v83 = vld [vmem:[#allocation2 + $0x70] sm:$0xff]
    %v84 = vld [vmem:[#allocation2 + $0x78] sm:$0xff]
    %v85 = vld [vmem:[#allocation2 + $0x80] sm:$0xff]
    %v86 = vld [vmem:[#allocation2 + $0x88] sm:$0xff]
    %v87 = vld [vmem:[#allocation2 + $0x90] sm:$0xff]
    %v88 = vld [vmem:[#allocation2 + $0x98] sm:$0xff]
    %v89 = vld [vmem:[#allocation2 + $0xa0] sm:$0xff]
    %v90 = vld [vmem:[#allocation2 + $0xa8] sm:$0xff]
    %v91 = vld [vmem:[#allocation2 + $0xb0] sm:$0xff]
    %v92 = vld [vmem:[#allocation2 + $0xb8] sm:$0xff]
    %v93 = vld [vmem:[#allocation2 + $0xc0] sm:$0xff]
    %v94 = vld [vmem:[#allocation2 + $0xc8] sm:$0xff]
    %v95 = vld [vmem:[#allocation2 + $0xd0] sm:$0xff]
    %v96 = vld [vmem:[#allocation2 + $0xd8] sm:$0xff]
    %v97 = vld [vmem:[#allocation2 + $0xe0] sm:$0xff]
    %v98 = vld [vmem:[#allocation2 + $0xe8] sm:$0xff]
    %v99 = vld [vmem:[#allocation2 + $0xf0] sm:$0xff]
    %v100 = vld [vmem:[#allocation2 + $0xf8] sm:$0xff]
    %v101 = vld [vmem:[#allocation2 + $0x100] sm:$0xff]
    %v102 = vld [vmem:[#allocation2 + $0x108] sm:$0xff]
    %v103 = vld [vmem:[#allocation2 + $0x110] sm:$0xff]
    %v104 = vld [vmem:[#allocation2 + $0x118] sm:$0xff]
    %v105 = vld [vmem:[#allocation2 + $0x120] sm:$0xff]
    %v106 = vld [vmem:[#allocation2 + $0x128] sm:$0xff]
    %v107 = vld [vmem:[#allocation2 + $0x130] sm:$0xff]
    %v108 = vld [vmem:[#allocation2 + $0x138] sm:$0xff]
    %v109 = vld [vmem:[#allocation2 + $0x140] sm:$0xff]
    %v110 = vld [vmem:[#allocation2 + $0x148] sm:$0xff]
    %v111 = vld [vmem:[#allocation2 + $0x150] sm:$0xff]
    %v112 = vld [vmem:[#allocation2 + $0x158] sm:$0xff]
    %v113 = vld [vmem:[#allocation2 + $0x160] sm:$0xff]
    %v114 = vld [vmem:[#allocation2 + $0x168] sm:$0xff]
    %v115 = vld [vmem:[#allocation2 + $0x170] sm:$0xff]
    %v116 = vld [vmem:[#allocation2 + $0x178] sm:$0xff]
    %v117 = vld [vmem:[#allocation2 + $0x180] sm:$0xff]
    %v118 = vld [vmem:[#allocation2 + $0x188] sm:$0xff]
    %v119 = vld [vmem:[#allocation2 + $0x190] sm:$0xff]
    %v120 = vld [vmem:[#allocation2 + $0x198] sm:$0xff]
    %v121 = vld [vmem:[#allocation2 + $0x1a0] sm:$0xff]
    %v122 = vld [vmem:[#allocation2 + $0x1a8] sm:$0xff]
    %v123 = vld [vmem:[#allocation2 + $0x1b0] sm:$0xff]
    %v124 = vld [vmem:[#allocation2 + $0x1b8] sm:$0xff]
    %v125 = vld [vmem:[#allocation2 + $0x1c0] sm:$0xff]
    %v126 = vld [vmem:[#allocation2 + $0x1c8] sm:$0xff]
    %v127 = vld [vmem:[#allocation2 + $0x1d0] sm:$0xff]
    %v128 = vld [vmem:[#allocation2 + $0x1d8] sm:$0xff]
    %v129 = vld [vmem:[#allocation2 + $0x1e0] sm:$0xff]
    %v130 = vld [vmem:[#allocation2 + $0x1e8] sm:$0xff]
    %v131 = vld [vmem:[#allocation2 + $0x1f0] sm:$0xff]
    %v132 = vld [vmem:[#allocation2 + $0x1f8] sm:$0xff]
    %v133 = vld [vmem:[#allocation2 + $0x200] sm:$0xff]
    %v134 = vld [vmem:[#allocation2 + $0x208] sm:$0xff]
    %v135 = vld [vmem:[#allocation2 + $0x210] sm:$0xff]
    %v136 = vld [vmem:[#allocation2 + $0x218] sm:$0xff]
    %v137 = vld [vmem:[#allocation2 + $0x220] sm:$0xff]
    %v138 = vld [vmem:[#allocation2 + $0x228] sm:$0xff]
    %v139 = vld [vmem:[#allocation2 + $0x230] sm:$0xff]
    %v140 = vld [vmem:[#allocation2 + $0x238] sm:$0xff]
    %v141 = vld [vmem:[#allocation2 + $0x240] sm:$0xff]
    %v142 = vld [vmem:[#allocation2 + $0x248] sm:$0xff]
    %v143 = vld [vmem:[#allocation2 + $0x250] sm:$0xff]
    %v144 = vld [vmem:[#allocation2 + $0x258] sm:$0xff]
    %v145 = vld [vmem:[#allocation2 + $0x260] sm:$0xff]
    %v146 = vld [vmem:[#allocation2 + $0x268] sm:$0xff]
    %v147 = vld [vmem:[#allocation2 + $0x270] sm:$0xff]
    %v148 = vld [vmem:[#allocation2 + $0x278] sm:$0xff]
    %v149 = vld [vmem:[#allocation2 + $0x280] sm:$0xff]
    %v150 = vld [vmem:[#allocation2 + $0x288] sm:$0xff]
    %v151 = vld [vmem:[#allocation2 + $0x290] sm:$0xff]
    %v152 = vld [vmem:[#allocation2 + $0x298] sm:$0xff]
    %v153 = vld [vmem:[#allocation2 + $0x2a0] sm:$0xff]
    %v154 = vld [vmem:[#allocation2 + $0x2a8] sm:$0xff]
    %v155 = vld [vmem:[#allocation2 + $0x2b0] sm:$0xff]
    %v156 = vld [vmem:[#allocation2 + $0x2b8] sm:$0xff]
    %v157 = vld [vmem:[#allocation2 + $0x2c0] sm:$0xff]
    %v158 = vld [vmem:[#allocation2 + $0x2c8] sm:$0xff]
    %v159 = vld [vmem:[#allocation2 + $0x2d0] sm:$0xff]
    %v160 = vld [vmem:[#allocation2 + $0x2d8] sm:$0xff]
    %v161 = vld [vmem:[#allocation2 + $0x2e0] sm:$0xff]
    %v162 = vld [vmem:[#allocation2 + $0x2e8] sm:$0xff]
    %v163 = vld [vmem:[#allocation2 + $0x2f0] sm:$0xff]
    %v164 = vld [vmem:[#allocation2 + $0x2f8] sm:$0xff]
    %v165 = vld [vmem:[#allocation2 + $0x300] sm:$0xff]
    %v166 = vld [vmem:[#allocation2 + $0x308] sm:$0xff]
    %v167 = vld [vmem:[#allocation2 + $0x310] sm:$0xff]
    %v168 = vld [vmem:[#allocation2 + $0x318] sm:$0xff]
    %v169 = vld [vmem:[#allocation2 + $0x320] sm:$0xff]
    %v170 = vld [vmem:[#allocation2 + $0x328] sm:$0xff]
    %v171 = vld [vmem:[#allocation2 + $0x330] sm:$0xff]
    %v172 = vld [vmem:[#allocation2 + $0x338] sm:$0xff]
    %v173 = vld [vmem:[#allocation2 + $0x340] sm:$0xff]
    %v174 = vld [vmem:[#allocation2 + $0x348] sm:$0xff]
    %v175 = vld [vmem:[#allocation2 + $0x350] sm:$0xff]
    %v176 = vld [vmem:[#allocation2 + $0x358] sm:$0xff]
    %v177 = vld [vmem:[#allocation2 + $0x360] sm:$0xff]
    %v178 = vld [vmem:[#allocation2 + $0x368] sm:$0xff]
    %v179 = vld [vmem:[#allocation2 + $0x370] sm:$0xff]
    %v180 = vld [vmem:[#allocation2 + $0x378] sm:$0xff]
    %v181 = vld [vmem:[#allocation2 + $0x380] sm:$0xff]
    %v182 = vld [vmem:[#allocation2 + $0x388] sm:$0xff]
    %v183 = vld [vmem:[#allocation2 + $0x390] sm:$0xff]
    %v184 = vld [vmem:[#allocation2 + $0x398] sm:$0xff]
    %v185 = vld [vmem:[#allocation2 + $0x3a0] sm:$0xff]
    %v186 = vld [vmem:[#allocation2 + $0x3a8] sm:$0xff]
    %v187 = vld [vmem:[#allocation2 + $0x3b0] sm:$0xff]
    %v188 = vld [vmem:[#allocation2 + $0x3b8] sm:$0xff]
    %v189 = vld [vmem:[#allocation2 + $0x3c0] sm:$0xff]
    %v190 = vld [vmem:[#allocation2 + $0x3c8] sm:$0xff]
    %v191 = vld [vmem:[#allocation2 + $0x3d0] sm:$0xff]
    %v192 = vld [vmem:[#allocation2 + $0x3d8] sm:$0xff]
    %v193 = vld [vmem:[#allocation2 + $0x3e0] sm:$0xff]
    %v194 = vld [vmem:[#allocation2 + $0x3e8] sm:$0xff]
    %v195 = vld [vmem:[#allocation2 + $0x3f0] sm:$0xff]
    %v196 = vld [vmem:[#allocation2 + $0x3f8] sm:$0xff]
    %v197 = vld [vmem:[#allocation2 + $0x400] sm:$0xff]
    %v198 = vld [vmem:[#allocation2 + $0x408] sm:$0xff]
    %v199 = vld [vmem:[#allocation2 + $0x410] sm:$0xff]
    %v200 = vld [vmem:[#allocation2 + $0x418] sm:$0xff]
    %v201 = vld [vmem:[#allocation2 + $0x420] sm:$0xff]
    %v202 = vld [vmem:[#allocation2 + $0x428] sm:$0xff]
    %v203 = vld [vmem:[#allocation2 + $0x430] sm:$0xff]
    %v204 = vld [vmem:[#allocation2 + $0x438] sm:$0xff]
    %v205 = vld [vmem:[#allocation2 + $0x440] sm:$0xff]
    %v206 = vld [vmem:[#allocation2 + $0x448] sm:$0xff]
    %v207 = vld [vmem:[#allocation2 + $0x450] sm:$0xff]
    %v208 = vld [vmem:[#allocation2 + $0x458] sm:$0xff]
    %v209 = vld [vmem:[#allocation2 + $0x460] sm:$0xff]
    %v210 = vld [vmem:[#allocation2 + $0x468] sm:$0xff]
    %v211 = vld [vmem:[#allocation2 + $0x470] sm:$0xff]
    %v212 = vld [vmem:[#allocation2 + $0x478] sm:$0xff]
    %v213 = vld [vmem:[#allocation2 + $0x480] sm:$0xff]
    %v214 = vld [vmem:[#allocation2 + $0x488] sm:$0xff]
    %v215 = vld [vmem:[#allocation2 + $0x490] sm:$0xff]
    %v216 = vld [vmem:[#allocation2 + $0x498] sm:$0xff]
    %v217 = vld [vmem:[#allocation2 + $0x4a0] sm:$0xff]
    %v218 = vld [vmem:[#allocation2 + $0x4a8] sm:$0xff]
    %v219 = vld [vmem:[#allocation2 + $0x4b0] sm:$0xff]
    %v220 = vld [vmem:[#allocation2 + $0x4b8] sm:$0xff]
    %v221 = vld [vmem:[#allocation2 + $0x4c0] sm:$0xff]
    %v222 = vld [vmem:[#allocation2 + $0x4c8] sm:$0xff]
    %v223 = vld [vmem:[#allocation2 + $0x4d0] sm:$0xff]
    %v224 = vld [vmem:[#allocation2 + $0x4d8] sm:$0xff]
    %v225 = vld [vmem:[#allocation2 + $0x4e0] sm:$0xff]
    %v226 = vld [vmem:[#allocation2 + $0x4e8] sm:$0xff]
    %v227 = vld [vmem:[#allocation2 + $0x4f0] sm:$0xff]
    %v228 = vld [vmem:[#allocation2 + $0x4f8] sm:$0xff]
    %v229 = vld [vmem:[#allocation2 + $0x500] sm:$0xff]
    %v230 = vld [vmem:[#allocation2 + $0x508] sm:$0xff]
    %v231 = vld [vmem:[#allocation2 + $0x510] sm:$0xff]
    %v232 = vld [vmem:[#allocation2 + $0x518] sm:$0xff]
    %v233 = vld [vmem:[#allocation2 + $0x520] sm:$0xff]
    %v234 = vld [vmem:[#allocation2 + $0x528] sm:$0xff]
    %v235 = vld [vmem:[#allocation2 + $0x530] sm:$0xff]
    %v236 = vld [vmem:[#allocation2 + $0x538] sm:$0xff]
    %v237 = vld [vmem:[#allocation2 + $0x540] sm:$0xff]
    %v238 = vld [vmem:[#allocation2 + $0x548] sm:$0xff]
    %v239 = vld [vmem:[#allocation2 + $0x550] sm:$0xff]
    %v240 = vld [vmem:[#allocation2 + $0x558] sm:$0xff]
    %v241 = vld [vmem:[#allocation2 + $0x560] sm:$0xff]
    %v242 = vld [vmem:[#allocation2 + $0x568] sm:$0xff]
    %v243 = vld [vmem:[#allocation2 + $0x570] sm:$0xff]
    %v244 = vld [vmem:[#allocation2 + $0x578] sm:$0xff]
    %v245 = vld [vmem:[#allocation2 + $0x580] sm:$0xff]
    %v246 = vld [vmem:[#allocation2 + $0x588] sm:$0xff]
    %v247 = vld [vmem:[#allocation2 + $0x590] sm:$0xff]
    %v248 = vld [vmem:[#allocation2 + $0x598] sm:$0xff]
    %v249 = vld [vmem:[#allocation2 + $0x5a0] sm:$0xff]
    %v250 = vld [vmem:[#allocation2 + $0x5a8] sm:$0xff]
    %v251 = vld [vmem:[#allocation2 + $0x5b0] sm:$0xff]
    %v252 = vld [vmem:[#allocation2 + $0x5b8] sm:$0xff]
    %v253 = vld [vmem:[#allocation2 + $0x5c0] sm:$0xff]
    %v254 = vld [vmem:[#allocation2 + $0x5c8] sm:$0xff]
    %v255 = vld [vmem:[#allocation2 + $0x5d0] sm:$0xff]
    %v256 = vld [vmem:[#allocation2 + $0x5d8] sm:$0xff]
    %v257 = vld [vmem:[#allocation2 + $0x5e0] sm:$0xff]
    %v258 = vld [vmem:[#allocation2 + $0x5e8] sm:$0xff]
    %v259 = vld [vmem:[#allocation2 + $0x5f0] sm:$0xff]
    %v260 = vld [vmem:[#allocation2 + $0x5f8] sm:$0xff]
    %v261 = vld [vmem:[#allocation2 + $0x600] sm:$0xff]
    %v262 = vld [vmem:[#allocation2 + $0x608] sm:$0xff]
    %v263 = vld [vmem:[#allocation2 + $0x610] sm:$0xff]
    %v264 = vld [vmem:[#allocation2 + $0x618] sm:$0xff]
    %v265 = vld [vmem:[#allocation2 + $0x620] sm:$0xff]
    %v266 = vld [vmem:[#allocation2 + $0x628] sm:$0xff]
    %v267 = vld [vmem:[#allocation2 + $0x630] sm:$0xff]
    %v268 = vld [vmem:[#allocation2 + $0x638] sm:$0xff]
    %v269 = vld [vmem:[%s2] sm:$0xff]
    %v271 = vlaneseq
    %v272 = vshrl.u32 %v271, 7
    %v273 = vsub.s32 0, %v272
    %v274 = vrot.slane %v269, %v273
    %v275 = vlaneseq
    %v276 = vshrl.u32 %v275, 7
    %v277 = vsub.s32 1, %v276
    %v278 = vrot.slane %v269, %v277
    %v279 = vlaneseq
    %v280 = vshrl.u32 %v279, 7
    %v281 = vsub.s32 2, %v280
    %v282 = vrot.slane %v269, %v281
    %v283 = vlaneseq
    %v284 = vshrl.u32 %v283, 7
    %v285 = vsub.s32 3, %v284
    %v286 = vrot.slane %v269, %v285
    %v287 = vlaneseq
    %v288 = vshrl.u32 %v287, 7
    %v289 = vsub.s32 4, %v288
    %v290 = vrot.slane %v269, %v289
    %v291 = vlaneseq
    %v292 = vshrl.u32 %v291, 7
    %v293 = vsub.s32 5, %v292
    %v294 = vrot.slane %v269, %v293
    %v295 = vlaneseq
    %v296 = vshrl.u32 %v295, 7
    %v297 = vsub.s32 6, %v296
    %v298 = vrot.slane %v269, %v297
    %v299 = vlaneseq
    %v300 = vshrl.u32 %v299, 7
    %v301 = vsub.s32 7, %v300
    %v302 = vrot.slane %v269, %v301
    %v511 = vunpack.c.l.b16 %v69
    %v512 = vunpack.c.h.b16 %v69
    %v513 = vunpack.c.l.b16 %v70
    %v514 = vunpack.c.h.b16 %v70
    %v515 = vunpack.c.l.b16 %v71
    %v516 = vunpack.c.h.b16 %v71
    %v517 = vunpack.c.l.b16 %v72
    %v518 = vunpack.c.h.b16 %v72
    %v519 = vunpack.c.l.b16 %v73
    %v520 = vunpack.c.h.b16 %v73
    %v521 = vunpack.c.l.b16 %v74
    %v522 = vunpack.c.h.b16 %v74
    %v523 = vunpack.c.l.b16 %v75
    %v524 = vunpack.c.h.b16 %v75
    %v525 = vunpack.c.l.b16 %v76
    %v526 = vunpack.c.h.b16 %v76
    %v527 = vunpack.c.l.b16 %v77
    %v528 = vunpack.c.h.b16 %v77
    %v529 = vunpack.c.l.b16 %v78
    %v530 = vunpack.c.h.b16 %v78
    %v531 = vunpack.c.l.b16 %v79
    %v532 = vunpack.c.h.b16 %v79
    %v533 = vunpack.c.l.b16 %v80
    %v534 = vunpack.c.h.b16 %v80
    %v535 = vunpack.c.l.b16 %v81
    %v536 = vunpack.c.h.b16 %v81
    %v537 = vunpack.c.l.b16 %v82
    %v538 = vunpack.c.h.b16 %v82
    %v539 = vunpack.c.l.b16 %v83
    %v540 = vunpack.c.h.b16 %v83
    %v541 = vunpack.c.l.b16 %v84
    %v542 = vunpack.c.h.b16 %v84
    %v543 = vunpack.c.l.b16 %v85
    %v544 = vunpack.c.h.b16 %v85
    %v545 = vunpack.c.l.b16 %v86
    %v546 = vunpack.c.h.b16 %v86
    %v547 = vunpack.c.l.b16 %v87
    %v548 = vunpack.c.h.b16 %v87
    %v549 = vunpack.c.l.b16 %v88
    %v550 = vunpack.c.h.b16 %v88
    %v551 = vunpack.c.l.b16 %v89
    %v552 = vunpack.c.h.b16 %v89
    %v553 = vunpack.c.l.b16 %v90
    %v554 = vunpack.c.h.b16 %v90
    %v555 = vunpack.c.l.b16 %v91
    %v556 = vunpack.c.h.b16 %v91
    %v557 = vunpack.c.l.b16 %v92
    %v558 = vunpack.c.h.b16 %v92
    %v559 = vunpack.c.l.b16 %v93
    %v560 = vunpack.c.h.b16 %v93
    %v561 = vunpack.c.l.b16 %v94
    %v562 = vunpack.c.h.b16 %v94
    %v563 = vunpack.c.l.b16 %v95
    %v564 = vunpack.c.h.b16 %v95
    %v565 = vunpack.c.l.b16 %v96
    %v566 = vunpack.c.h.b16 %v96
    %v567 = vunpack.c.l.b16 %v97
    %v568 = vunpack.c.h.b16 %v97
    %v569 = vunpack.c.l.b16 %v98
    %v570 = vunpack.c.h.b16 %v98
    %v571 = vunpack.c.l.b16 %v99
    %v572 = vunpack.c.h.b16 %v99
    %v573 = vunpack.c.l.b16 %v100
    %v574 = vunpack.c.h.b16 %v100
    %v575 = vunpack.c.l.b16 %v101
    %v576 = vunpack.c.h.b16 %v101
    %v577 = vunpack.c.l.b16 %v102
    %v578 = vunpack.c.h.b16 %v102
    %v579 = vunpack.c.l.b16 %v103
    %v580 = vunpack.c.h.b16 %v103
    %v581 = vunpack.c.l.b16 %v104
    %v582 = vunpack.c.h.b16 %v104
    %v583 = vunpack.c.l.b16 %v105
    %v584 = vunpack.c.h.b16 %v105
    %v585 = vunpack.c.l.b16 %v106
    %v586 = vunpack.c.h.b16 %v106
    %v587 = vunpack.c.l.b16 %v107
    %v588 = vunpack.c.h.b16 %v107
    %v589 = vunpack.c.l.b16 %v108
    %v590 = vunpack.c.h.b16 %v108
    %v591 = vunpack.c.l.b16 %v109
    %v592 = vunpack.c.h.b16 %v109
    %v593 = vunpack.c.l.b16 %v110
    %v594 = vunpack.c.h.b16 %v110
    %v595 = vunpack.c.l.b16 %v111
    %v596 = vunpack.c.h.b16 %v111
    %v597 = vunpack.c.l.b16 %v112
    %v598 = vunpack.c.h.b16 %v112
    %v599 = vunpack.c.l.b16 %v113
    %v600 = vunpack.c.h.b16 %v113
    %v601 = vunpack.c.l.b16 %v114
    %v602 = vunpack.c.h.b16 %v114
    %v603 = vunpack.c.l.b16 %v115
    %v604 = vunpack.c.h.b16 %v115
    %v605 = vunpack.c.l.b16 %v116
    %v606 = vunpack.c.h.b16 %v116
    %v607 = vunpack.c.l.b16 %v117
    %v608 = vunpack.c.h.b16 %v117
    %v609 = vunpack.c.l.b16 %v118
    %v610 = vunpack.c.h.b16 %v118
    %v611 = vunpack.c.l.b16 %v119
    %v612 = vunpack.c.h.b16 %v119
    %v613 = vunpack.c.l.b16 %v120
    %v614 = vunpack.c.h.b16 %v120
    %v615 = vunpack.c.l.b16 %v121
    %v616 = vunpack.c.h.b16 %v121
    %v617 = vunpack.c.l.b16 %v122
    %v618 = vunpack.c.h.b16 %v122
    %v619 = vunpack.c.l.b16 %v123
    %v620 = vunpack.c.h.b16 %v123
    %v621 = vunpack.c.l.b16 %v124
    %v622 = vunpack.c.h.b16 %v124
    %v623 = vunpack.c.l.b16 %v125
    %v624 = vunpack.c.h.b16 %v125
    %v625 = vunpack.c.l.b16 %v126
    %v626 = vunpack.c.h.b16 %v126
    %v627 = vunpack.c.l.b16 %v127
    %v628 = vunpack.c.h.b16 %v127
    %v629 = vunpack.c.l.b16 %v128
    %v630 = vunpack.c.h.b16 %v128
    %v631 = vunpack.c.l.b16 %v129
    %v632 = vunpack.c.h.b16 %v129
    %v633 = vunpack.c.l.b16 %v130
    %v634 = vunpack.c.h.b16 %v130
    %v635 = vunpack.c.l.b16 %v131
    %v636 = vunpack.c.h.b16 %v131
    %v637 = vunpack.c.l.b16 %v132
    %v638 = vunpack.c.h.b16 %v132
    %v639 = vunpack.c.l.b16 %v133
    %v640 = vunpack.c.h.b16 %v133
    %v641 = vunpack.c.l.b16 %v134
    %v642 = vunpack.c.h.b16 %v134
    %v643 = vunpack.c.l.b16 %v135
    %v644 = vunpack.c.h.b16 %v135
    %v645 = vunpack.c.l.b16 %v136
    %v646 = vunpack.c.h.b16 %v136
    %v647 = vunpack.c.l.b16 %v137
    %v648 = vunpack.c.h.b16 %v137
    %v649 = vunpack.c.l.b16 %v138
    %v650 = vunpack.c.h.b16 %v138
    %v651 = vunpack.c.l.b16 %v139
    %v652 = vunpack.c.h.b16 %v139
    %v653 = vunpack.c.l.b16 %v140
    %v654 = vunpack.c.h.b16 %v140
    %v655 = vunpack.c.l.b16 %v141
    %v656 = vunpack.c.h.b16 %v141
    %v657 = vunpack.c.l.b16 %v142
    %v658 = vunpack.c.h.b16 %v142
    %v659 = vunpack.c.l.b16 %v143
    %v660 = vunpack.c.h.b16 %v143
    %v661 = vunpack.c.l.b16 %v144
    %v662 = vunpack.c.h.b16 %v144
    %v663 = vunpack.c.l.b16 %v145
    %v664 = vunpack.c.h.b16 %v145
    %v665 = vunpack.c.l.b16 %v146
    %v666 = vunpack.c.h.b16 %v146
    %v667 = vunpack.c.l.b16 %v147
    %v668 = vunpack.c.h.b16 %v147
    %v669 = vunpack.c.l.b16 %v148
    %v670 = vunpack.c.h.b16 %v148
    %v671 = vunpack.c.l.b16 %v149
    %v672 = vunpack.c.h.b16 %v149
    %v673 = vunpack.c.l.b16 %v150
    %v674 = vunpack.c.h.b16 %v150
    %v675 = vunpack.c.l.b16 %v151
    %v676 = vunpack.c.h.b16 %v151
    %v677 = vunpack.c.l.b16 %v152
    %v678 = vunpack.c.h.b16 %v152
    %v679 = vunpack.c.l.b16 %v153
    %v680 = vunpack.c.h.b16 %v153
    %v681 = vunpack.c.l.b16 %v154
    %v682 = vunpack.c.h.b16 %v154
    %v683 = vunpack.c.l.b16 %v155
    %v684 = vunpack.c.h.b16 %v155
    %v685 = vunpack.c.l.b16 %v156
    %v686 = vunpack.c.h.b16 %v156
    %v687 = vunpack.c.l.b16 %v157
    %v688 = vunpack.c.h.b16 %v157
    %v689 = vunpack.c.l.b16 %v158
    %v690 = vunpack.c.h.b16 %v158
    %v691 = vunpack.c.l.b16 %v159
    %v692 = vunpack.c.h.b16 %v159
    %v693 = vunpack.c.l.b16 %v160
    %v694 = vunpack.c.h.b16 %v160
    %v695 = vunpack.c.l.b16 %v161
    %v696 = vunpack.c.h.b16 %v161
    %v697 = vunpack.c.l.b16 %v162
    %v698 = vunpack.c.h.b16 %v162
    %v699 = vunpack.c.l.b16 %v163
    %v700 = vunpack.c.h.b16 %v163
    %v701 = vunpack.c.l.b16 %v164
    %v702 = vunpack.c.h.b16 %v164
    %v703 = vunpack.c.l.b16 %v165
    %v704 = vunpack.c.h.b16 %v165
    %v705 = vunpack.c.l.b16 %v166
    %v706 = vunpack.c.h.b16 %v166
    %v707 = vunpack.c.l.b16 %v167
    %v708 = vunpack.c.h.b16 %v167
    %v709 = vunpack.c.l.b16 %v168
    %v710 = vunpack.c.h.b16 %v168
    %v711 = vunpack.c.l.b16 %v169
    %v712 = vunpack.c.h.b16 %v169
    %v713 = vunpack.c.l.b16 %v170
    %v714 = vunpack.c.h.b16 %v170
    %v715 = vunpack.c.l.b16 %v171
    %v716 = vunpack.c.h.b16 %v171
    %v717 = vunpack.c.l.b16 %v172
    %v718 = vunpack.c.h.b16 %v172
    %v719 = vunpack.c.l.b16 %v173
    %v720 = vunpack.c.h.b16 %v173
    %v721 = vunpack.c.l.b16 %v174
    %v722 = vunpack.c.h.b16 %v174
    %v723 = vunpack.c.l.b16 %v175
    %v724 = vunpack.c.h.b16 %v175
    %v725 = vunpack.c.l.b16 %v176
    %v726 = vunpack.c.h.b16 %v176
    %v727 = vunpack.c.l.b16 %v177
    %v728 = vunpack.c.h.b16 %v177
    %v729 = vunpack.c.l.b16 %v178
    %v730 = vunpack.c.h.b16 %v178
    %v731 = vunpack.c.l.b16 %v179
    %v732 = vunpack.c.h.b16 %v179
    %v733 = vunpack.c.l.b16 %v180
    %v734 = vunpack.c.h.b16 %v180
    %v735 = vunpack.c.l.b16 %v181
    %v736 = vunpack.c.h.b16 %v181
    %v737 = vunpack.c.l.b16 %v182
    %v738 = vunpack.c.h.b16 %v182
    %v739 = vunpack.c.l.b16 %v183
    %v740 = vunpack.c.h.b16 %v183
    %v741 = vunpack.c.l.b16 %v184
    %v742 = vunpack.c.h.b16 %v184
    %v743 = vunpack.c.l.b16 %v185
    %v744 = vunpack.c.h.b16 %v185
    %v745 = vunpack.c.l.b16 %v186
    %v746 = vunpack.c.h.b16 %v186
    %v747 = vunpack.c.l.b16 %v187
    %v748 = vunpack.c.h.b16 %v187
    %v749 = vunpack.c.l.b16 %v188
    %v750 = vunpack.c.h.b16 %v188
    %v751 = vunpack.c.l.b16 %v189
    %v752 = vunpack.c.h.b16 %v189
    %v753 = vunpack.c.l.b16 %v190
    %v754 = vunpack.c.h.b16 %v190
    %v755 = vunpack.c.l.b16 %v191
    %v756 = vunpack.c.h.b16 %v191
    %v757 = vunpack.c.l.b16 %v192
    %v758 = vunpack.c.h.b16 %v192
    %v759 = vunpack.c.l.b16 %v193
    %v760 = vunpack.c.h.b16 %v193
    %v761 = vunpack.c.l.b16 %v194
    %v762 = vunpack.c.h.b16 %v194
    %v763 = vunpack.c.l.b16 %v195
    %v764 = vunpack.c.h.b16 %v195
    %v765 = vunpack.c.l.b16 %v196
    %v766 = vunpack.c.h.b16 %v196
    %v767 = vunpack.c.l.b16 %v197
    %v768 = vunpack.c.h.b16 %v197
    %v769 = vunpack.c.l.b16 %v198
    %v770 = vunpack.c.h.b16 %v198
    %v771 = vunpack.c.l.b16 %v199
    %v772 = vunpack.c.h.b16 %v199
    %v773 = vunpack.c.l.b16 %v200
    %v774 = vunpack.c.h.b16 %v200
    %v775 = vunpack.c.l.b16 %v201
    %v776 = vunpack.c.h.b16 %v201
    %v777 = vunpack.c.l.b16 %v202
    %v778 = vunpack.c.h.b16 %v202
    %v779 = vunpack.c.l.b16 %v203
    %v780 = vunpack.c.h.b16 %v203
    %v781 = vunpack.c.l.b16 %v204
    %v782 = vunpack.c.h.b16 %v204
    %v783 = vunpack.c.l.b16 %v205
    %v784 = vunpack.c.h.b16 %v205
    %v785 = vunpack.c.l.b16 %v206
    %v786 = vunpack.c.h.b16 %v206
    %v787 = vunpack.c.l.b16 %v207
    %v788 = vunpack.c.h.b16 %v207
    %v789 = vunpack.c.l.b16 %v208
    %v790 = vunpack.c.h.b16 %v208
    %v791 = vunpack.c.l.b16 %v209
    %v792 = vunpack.c.h.b16 %v209
    %v793 = vunpack.c.l.b16 %v210
    %v794 = vunpack.c.h.b16 %v210
    %v795 = vunpack.c.l.b16 %v211
    %v796 = vunpack.c.h.b16 %v211
    %v797 = vunpack.c.l.b16 %v212
    %v798 = vunpack.c.h.b16 %v212
    %v799 = vunpack.c.l.b16 %v213
    %v800 = vunpack.c.h.b16 %v213
    %v801 = vunpack.c.l.b16 %v214
    %v802 = vunpack.c.h.b16 %v214
    %v803 = vunpack.c.l.b16 %v215
    %v804 = vunpack.c.h.b16 %v215
    %v805 = vunpack.c.l.b16 %v216
    %v806 = vunpack.c.h.b16 %v216
    %v807 = vunpack.c.l.b16 %v217
    %v808 = vunpack.c.h.b16 %v217
    %v809 = vunpack.c.l.b16 %v218
    %v810 = vunpack.c.h.b16 %v218
    %v811 = vunpack.c.l.b16 %v219
    %v812 = vunpack.c.h.b16 %v219
    %v813 = vunpack.c.l.b16 %v220
    %v814 = vunpack.c.h.b16 %v220
    %v815 = vunpack.c.l.b16 %v221
    %v816 = vunpack.c.h.b16 %v221
    %v817 = vunpack.c.l.b16 %v222
    %v818 = vunpack.c.h.b16 %v222
    %v819 = vunpack.c.l.b16 %v223
    %v820 = vunpack.c.h.b16 %v223
    %v821 = vunpack.c.l.b16 %v224
    %v822 = vunpack.c.h.b16 %v224
    %v823 = vunpack.c.l.b16 %v225
    %v824 = vunpack.c.h.b16 %v225
    %v825 = vunpack.c.l.b16 %v226
    %v826 = vunpack.c.h.b16 %v226
    %v827 = vunpack.c.l.b16 %v227
    %v828 = vunpack.c.h.b16 %v227
    %v829 = vunpack.c.l.b16 %v228
    %v830 = vunpack.c.h.b16 %v228
    %v831 = vunpack.c.l.b16 %v229
    %v832 = vunpack.c.h.b16 %v229
    %v833 = vunpack.c.l.b16 %v230
    %v834 = vunpack.c.h.b16 %v230
    %v835 = vunpack.c.l.b16 %v231
    %v836 = vunpack.c.h.b16 %v231
    %v837 = vunpack.c.l.b16 %v232
    %v838 = vunpack.c.h.b16 %v232
    %v839 = vunpack.c.l.b16 %v233
    %v840 = vunpack.c.h.b16 %v233
    %v841 = vunpack.c.l.b16 %v234
    %v842 = vunpack.c.h.b16 %v234
    %v843 = vunpack.c.l.b16 %v235
    %v844 = vunpack.c.h.b16 %v235
    %v845 = vunpack.c.l.b16 %v236
    %v846 = vunpack.c.h.b16 %v236
    %v847 = vunpack.c.l.b16 %v237
    %v848 = vunpack.c.h.b16 %v237
    %v849 = vunpack.c.l.b16 %v238
    %v850 = vunpack.c.h.b16 %v238
    %v851 = vunpack.c.l.b16 %v239
    %v852 = vunpack.c.h.b16 %v239
    %v853 = vunpack.c.l.b16 %v240
    %v854 = vunpack.c.h.b16 %v240
    %v855 = vunpack.c.l.b16 %v241
    %v856 = vunpack.c.h.b16 %v241
    %v857 = vunpack.c.l.b16 %v242
    %v858 = vunpack.c.h.b16 %v242
    %v859 = vunpack.c.l.b16 %v243
    %v860 = vunpack.c.h.b16 %v243
    %v861 = vunpack.c.l.b16 %v244
    %v862 = vunpack.c.h.b16 %v244
    %v863 = vunpack.c.l.b16 %v245
    %v864 = vunpack.c.h.b16 %v245
    %v865 = vunpack.c.l.b16 %v246
    %v866 = vunpack.c.h.b16 %v246
    %v867 = vunpack.c.l.b16 %v247
    %v868 = vunpack.c.h.b16 %v247
    %v869 = vunpack.c.l.b16 %v248
    %v870 = vunpack.c.h.b16 %v248
    %v871 = vunpack.c.l.b16 %v249
    %v872 = vunpack.c.h.b16 %v249
    %v873 = vunpack.c.l.b16 %v250
    %v874 = vunpack.c.h.b16 %v250
    %v875 = vunpack.c.l.b16 %v251
    %v876 = vunpack.c.h.b16 %v251
    %v877 = vunpack.c.l.b16 %v252
    %v878 = vunpack.c.h.b16 %v252
    %v879 = vunpack.c.l.b16 %v253
    %v880 = vunpack.c.h.b16 %v253
    %v881 = vunpack.c.l.b16 %v254
    %v882 = vunpack.c.h.b16 %v254
    %v883 = vunpack.c.l.b16 %v255
    %v884 = vunpack.c.h.b16 %v255
    %v885 = vunpack.c.l.b16 %v256
    %v886 = vunpack.c.h.b16 %v256
    %v887 = vunpack.c.l.b16 %v257
    %v888 = vunpack.c.h.b16 %v257
    %v889 = vunpack.c.l.b16 %v258
    %v890 = vunpack.c.h.b16 %v258
    %v891 = vunpack.c.l.b16 %v259
    %v892 = vunpack.c.h.b16 %v259
    %v893 = vunpack.c.l.b16 %v260
    %v894 = vunpack.c.h.b16 %v260
    %v895 = vunpack.c.l.b16 %v261
    %v896 = vunpack.c.h.b16 %v261
    %v897 = vunpack.c.l.b16 %v262
    %v898 = vunpack.c.h.b16 %v262
    %v899 = vunpack.c.l.b16 %v263
    %v900 = vunpack.c.h.b16 %v263
    %v901 = vunpack.c.l.b16 %v264
    %v902 = vunpack.c.h.b16 %v264
    %v903 = vunpack.c.l.b16 %v265
    %v904 = vunpack.c.h.b16 %v265
    %v905 = vunpack.c.l.b16 %v266
    %v906 = vunpack.c.h.b16 %v266
    %v907 = vunpack.c.l.b16 %v267
    %v908 = vunpack.c.h.b16 %v267
    %v909 = vunpack.c.l.b16 %v268
    %v910 = vunpack.c.h.b16 %v268
    %v911 = vpack.c.b16 %v519, %v511
    %v912 = vpack.c.b16 %v520, %v512
    %v913 = vpack.c.b16 %v521, %v513
    %v914 = vpack.c.b16 %v522, %v514
    %v915 = vpack.c.b16 %v523, %v515
    %v916 = vpack.c.b16 %v524, %v516
    %v917 = vpack.c.b16 %v525, %v517
    %v918 = vpack.c.b16 %v526, %v518
    %v919 = vpack.c.b16 %v535, %v527
    %v920 = vpack.c.b16 %v536, %v528
    %v921 = vpack.c.b16 %v537, %v529
    %v922 = vpack.c.b16 %v538, %v530
    %v923 = vpack.c.b16 %v539, %v531
    %v924 = vpack.c.b16 %v540, %v532
    %v925 = vpack.c.b16 %v541, %v533
    %v926 = vpack.c.b16 %v542, %v534
    %v927 = vpack.c.b16 %v551, %v543
    %v928 = vpack.c.b16 %v552, %v544
    %v929 = vpack.c.b16 %v553, %v545
    %v930 = vpack.c.b16 %v554, %v546
    %v931 = vpack.c.b16 %v555, %v547
    %v932 = vpack.c.b16 %v556, %v548
    %v933 = vpack.c.b16 %v557, %v549
    %v934 = vpack.c.b16 %v558, %v550
    %v935 = vpack.c.b16 %v567, %v559
    %v936 = vpack.c.b16 %v568, %v560
    %v937 = vpack.c.b16 %v569, %v561
    %v938 = vpack.c.b16 %v570, %v562
    %v939 = vpack.c.b16 %v571, %v563
    %v940 = vpack.c.b16 %v572, %v564
    %v941 = vpack.c.b16 %v573, %v565
    %v942 = vpack.c.b16 %v574, %v566
    %v943 = vpack.c.b16 %v583, %v575
    %v944 = vpack.c.b16 %v584, %v576
    %v945 = vpack.c.b16 %v585, %v577
    %v946 = vpack.c.b16 %v586, %v578
    %v947 = vpack.c.b16 %v587, %v579
    %v948 = vpack.c.b16 %v588, %v580
    %v949 = vpack.c.b16 %v589, %v581
    %v950 = vpack.c.b16 %v590, %v582
    %v951 = vpack.c.b16 %v599, %v591
    %v952 = vpack.c.b16 %v600, %v592
    %v953 = vpack.c.b16 %v601, %v593
    %v954 = vpack.c.b16 %v602, %v594
    %v955 = vpack.c.b16 %v603, %v595
    %v956 = vpack.c.b16 %v604, %v596
    %v957 = vpack.c.b16 %v605, %v597
    %v958 = vpack.c.b16 %v606, %v598
    %v959 = vpack.c.b16 %v615, %v607
    %v960 = vpack.c.b16 %v616, %v608
    %v961 = vpack.c.b16 %v617, %v609
    %v962 = vpack.c.b16 %v618, %v610
    %v963 = vpack.c.b16 %v619, %v611
    %v964 = vpack.c.b16 %v620, %v612
    %v965 = vpack.c.b16 %v621, %v613
    %v966 = vpack.c.b16 %v622, %v614
    %v967 = vpack.c.b16 %v631, %v623
    %v968 = vpack.c.b16 %v632, %v624
    %v969 = vpack.c.b16 %v633, %v625
    %v970 = vpack.c.b16 %v634, %v626
    %v971 = vpack.c.b16 %v635, %v627
    %v972 = vpack.c.b16 %v636, %v628
    %v973 = vpack.c.b16 %v637, %v629
    %v974 = vpack.c.b16 %v638, %v630
    %v975 = vpack.c.b16 %v647, %v639
    %v976 = vpack.c.b16 %v648, %v640
    %v977 = vpack.c.b16 %v649, %v641
    %v978 = vpack.c.b16 %v650, %v642
    %v979 = vpack.c.b16 %v651, %v643
    %v980 = vpack.c.b16 %v652, %v644
    %v981 = vpack.c.b16 %v653, %v645
    %v982 = vpack.c.b16 %v654, %v646
    %v983 = vpack.c.b16 %v663, %v655
    %v984 = vpack.c.b16 %v664, %v656
    %v985 = vpack.c.b16 %v665, %v657
    %v986 = vpack.c.b16 %v666, %v658
    %v987 = vpack.c.b16 %v667, %v659
    %v988 = vpack.c.b16 %v668, %v660
    %v989 = vpack.c.b16 %v669, %v661
    %v990 = vpack.c.b16 %v670, %v662
    %v991 = vpack.c.b16 %v679, %v671
    %v992 = vpack.c.b16 %v680, %v672
    %v993 = vpack.c.b16 %v681, %v673
    %v994 = vpack.c.b16 %v682, %v674
    %v995 = vpack.c.b16 %v683, %v675
    %v996 = vpack.c.b16 %v684, %v676
    %v997 = vpack.c.b16 %v685, %v677
    %v998 = vpack.c.b16 %v686, %v678
    %v999 = vpack.c.b16 %v695, %v687
    %v1000 = vpack.c.b16 %v696, %v688
    %v1001 = vpack.c.b16 %v697, %v689
    %v1002 = vpack.c.b16 %v698, %v690
    %v1003 = vpack.c.b16 %v699, %v691
    %v1004 = vpack.c.b16 %v700, %v692
    %v1005 = vpack.c.b16 %v701, %v693
    %v1006 = vpack.c.b16 %v702, %v694
    %v1007 = vpack.c.b16 %v711, %v703
    %v1008 = vpack.c.b16 %v712, %v704
    %v1009 = vpack.c.b16 %v713, %v705
    %v1010 = vpack.c.b16 %v714, %v706
    %v1011 = vpack.c.b16 %v715, %v707
    %v1012 = vpack.c.b16 %v716, %v708
    %v1013 = vpack.c.b16 %v717, %v709
    %v1014 = vpack.c.b16 %v718, %v710
    %v1015 = vpack.c.b16 %v727, %v719
    %v1016 = vpack.c.b16 %v728, %v720
    %v1017 = vpack.c.b16 %v729, %v721
    %v1018 = vpack.c.b16 %v730, %v722
    %v1019 = vpack.c.b16 %v731, %v723
    %v1020 = vpack.c.b16 %v732, %v724
    %v1021 = vpack.c.b16 %v733, %v725
    %v1022 = vpack.c.b16 %v734, %v726
    %v1023 = vpack.c.b16 %v743, %v735
    %v1024 = vpack.c.b16 %v744, %v736
    %v1025 = vpack.c.b16 %v745, %v737
    %v1026 = vpack.c.b16 %v746, %v738
    %v1027 = vpack.c.b16 %v747, %v739
    %v1028 = vpack.c.b16 %v748, %v740
    %v1029 = vpack.c.b16 %v749, %v741
    %v1030 = vpack.c.b16 %v750, %v742
    %v1031 = vpack.c.b16 %v759, %v751
    %v1032 = vpack.c.b16 %v760, %v752
    %v1033 = vpack.c.b16 %v761, %v753
    %v1034 = vpack.c.b16 %v762, %v754
    %v1035 = vpack.c.b16 %v763, %v755
    %v1036 = vpack.c.b16 %v764, %v756
    %v1037 = vpack.c.b16 %v765, %v757
    %v1038 = vpack.c.b16 %v766, %v758
    %v1039 = vpack.c.b16 %v775, %v767
    %v1040 = vpack.c.b16 %v776, %v768
    %v1041 = vpack.c.b16 %v777, %v769
    %v1042 = vpack.c.b16 %v778, %v770
    %v1043 = vpack.c.b16 %v779, %v771
    %v1044 = vpack.c.b16 %v780, %v772
    %v1045 = vpack.c.b16 %v781, %v773
    %v1046 = vpack.c.b16 %v782, %v774
    %v1047 = vpack.c.b16 %v791, %v783
    %v1048 = vpack.c.b16 %v792, %v784
    %v1049 = vpack.c.b16 %v793, %v785
    %v1050 = vpack.c.b16 %v794, %v786
    %v1051 = vpack.c.b16 %v795, %v787
    %v1052 = vpack.c.b16 %v796, %v788
    %v1053 = vpack.c.b16 %v797, %v789
    %v1054 = vpack.c.b16 %v798, %v790
    %v1055 = vpack.c.b16 %v807, %v799
    %v1056 = vpack.c.b16 %v808, %v800
    %v1057 = vpack.c.b16 %v809, %v801
    %v1058 = vpack.c.b16 %v810, %v802
    %v1059 = vpack.c.b16 %v811, %v803
    %v1060 = vpack.c.b16 %v812, %v804
    %v1061 = vpack.c.b16 %v813, %v805
    %v1062 = vpack.c.b16 %v814, %v806
    %v1063 = vpack.c.b16 %v823, %v815
    %v1064 = vpack.c.b16 %v824, %v816
    %v1065 = vpack.c.b16 %v825, %v817
    %v1066 = vpack.c.b16 %v826, %v818
    %v1067 = vpack.c.b16 %v827, %v819
    %v1068 = vpack.c.b16 %v828, %v820
    %v1069 = vpack.c.b16 %v829, %v821
    %v1070 = vpack.c.b16 %v830, %v822
    %v1071 = vpack.c.b16 %v839, %v831
    %v1072 = vpack.c.b16 %v840, %v832
    %v1073 = vpack.c.b16 %v841, %v833
    %v1074 = vpack.c.b16 %v842, %v834
    %v1075 = vpack.c.b16 %v843, %v835
    %v1076 = vpack.c.b16 %v844, %v836
    %v1077 = vpack.c.b16 %v845, %v837
    %v1078 = vpack.c.b16 %v846, %v838
    %v1079 = vpack.c.b16 %v855, %v847
    %v1080 = vpack.c.b16 %v856, %v848
    %v1081 = vpack.c.b16 %v857, %v849
    %v1082 = vpack.c.b16 %v858, %v850
    %v1083 = vpack.c.b16 %v859, %v851
    %v1084 = vpack.c.b16 %v860, %v852
    %v1085 = vpack.c.b16 %v861, %v853
    %v1086 = vpack.c.b16 %v862, %v854
    %v1087 = vpack.c.b16 %v871, %v863
    %v1088 = vpack.c.b16 %v872, %v864
    %v1089 = vpack.c.b16 %v873, %v865
    %v1090 = vpack.c.b16 %v874, %v866
    %v1091 = vpack.c.b16 %v875, %v867
    %v1092 = vpack.c.b16 %v876, %v868
    %v1093 = vpack.c.b16 %v877, %v869
    %v1094 = vpack.c.b16 %v878, %v870
    %v1095 = vpack.c.b16 %v887, %v879
    %v1096 = vpack.c.b16 %v888, %v880
    %v1097 = vpack.c.b16 %v889, %v881
    %v1098 = vpack.c.b16 %v890, %v882
    %v1099 = vpack.c.b16 %v891, %v883
    %v1100 = vpack.c.b16 %v892, %v884
    %v1101 = vpack.c.b16 %v893, %v885
    %v1102 = vpack.c.b16 %v894, %v886
    %v1103 = vpack.c.b16 %v903, %v895
    %v1104 = vpack.c.b16 %v904, %v896
    %v1105 = vpack.c.b16 %v905, %v897
    %v1106 = vpack.c.b16 %v906, %v898
    %v1107 = vpack.c.b16 %v907, %v899
    %v1108 = vpack.c.b16 %v908, %v900
    %v1109 = vpack.c.b16 %v909, %v901
    %v1110 = vpack.c.b16 %v910, %v902
    %vm1311 = vcmask 130048
    %v1313 = vsel %vm1311, %v68, 0
    %1315 = vmatprep.subr.bf16.mxu0 %v968
    %1316 = vmatpush1.bf16.msra.mxu0 %v967
    %1317 = vmatprep.subr.bf16.mxu0 %v960
    %1318 = vmatpush1.bf16.msra.mxu0 %v959
    %1319 = vmatprep.subr.bf16.mxu0 %v952
    %1320 = vmatpush1.bf16.msra.mxu0 %v951
    %1321 = vmatprep.subr.bf16.mxu0 %v944
    %1322 = vmatpush1.bf16.msra.mxu0 %v943
    %1323 = vmatprep.subr.bf16.mxu0 %v936
    %1324 = vmatpush1.bf16.msra.mxu0 %v935
    %1325 = vmatprep.subr.bf16.mxu0 %v928
    %1326 = vmatpush1.bf16.msra.mxu0 %v927
    %1327 = vmatprep.subr.bf16.mxu0 %v920
    %1328 = vmatpush1.bf16.msra.mxu0 %v919
    %1329 = vmatprep.subr.bf16.mxu0 %v912
    %1330 = vmatpush1.bf16.msra.mxu0 %v911
    %1331 = vmatprep.subr.bf16.mxu0 %v1032
    %1332 = vmatpush2.bf16.msra.mxu0 %v1031
    %1333 = vmatprep.subr.bf16.mxu0 %v1024
    %1334 = vmatpush2.bf16.msra.mxu0 %v1023
    %1335 = vmatprep.subr.bf16.mxu0 %v1016
    %1336 = vmatpush2.bf16.msra.mxu0 %v1015
    %1337 = vmatprep.subr.bf16.mxu0 %v1008
    %1338 = vmatpush2.bf16.msra.mxu0 %v1007
    %1339 = vmatprep.subr.bf16.mxu0 %v1000
    %1340 = vmatpush2.bf16.msra.mxu0 %v999
    %1341 = vmatprep.subr.bf16.mxu0 %v992
    %1342 = vmatpush2.bf16.msra.mxu0 %v991
    %1343 = vmatprep.subr.bf16.mxu0 %v984
    %1344 = vmatpush2.bf16.msra.mxu0 %v983
    %1345 = vmatprep.subr.bf16.mxu0 %v976
    %1346 = vmatpush2.bf16.msra.mxu0 %v975
    %1347 = vmatprep.mubr.bf16.mxu0 %v66
    %1348 = vmatmul.mubr.bf16.gmra.mxu0 %v65
    %v1349 = vpop.f32.mrf.mxu0
    %v1350 = vadd.f32 %v274, %v1349
    %v1351 = vpop.f32.mrf.mxu0
    %v1352 = vadd.f32 %v278, %v1351
    %v1353 = vpop.f32.mrf.mxu0
    %v1354 = vpop.f32.mrf.mxu0
    %1355 = vdwg.mxu0
    %1356 = vmatprep.subr.bf16.mxu0 %v1096
    %1357 = vmatpush1.bf16.msra.mxu0 %v1095
    %1358 = vmatprep.subr.bf16.mxu0 %v1088
    %1359 = vmatpush1.bf16.msra.mxu0 %v1087
    %1360 = vmatprep.subr.bf16.mxu0 %v1080
    %1361 = vmatpush1.bf16.msra.mxu0 %v1079
    %1362 = vmatprep.subr.bf16.mxu0 %v1072
    %1363 = vmatpush1.bf16.msra.mxu0 %v1071
    %1364 = vmatprep.subr.bf16.mxu0 %v1064
    %1365 = vmatpush1.bf16.msra.mxu0 %v1063
    %1366 = vmatprep.subr.bf16.mxu0 %v1056
    %1367 = vmatpush1.bf16.msra.mxu0 %v1055
    %1368 = vmatprep.subr.bf16.mxu0 %v1048
    %1369 = vmatpush1.bf16.msra.mxu0 %v1047
    %1370 = vmatprep.subr.bf16.mxu0 %v1040
    %1371 = vmatpush1.bf16.msra.mxu0 %v1039
    %1372 = vmatprep.subr.bf16.mxu0 0
    %1373 = vmatpush2.bf16.msra.mxu0 0
    %1374 = vmatprep.subr.bf16.mxu0 0
    %1375 = vmatpush2.bf16.msra.mxu0 0
    %1376 = vmatprep.subr.bf16.mxu0 0
    %1377 = vmatpush2.bf16.msra.mxu0 0
    %1378 = vmatprep.subr.bf16.mxu0 0
    %1379 = vmatpush2.bf16.msra.mxu0 0
    %1380 = vmatprep.subr.bf16.mxu0 0
    %1381 = vmatpush2.bf16.msra.mxu0 0
    %1382 = vmatprep.subr.bf16.mxu0 0
    %1383 = vmatpush2.bf16.msra.mxu0 0
    %1384 = vmatprep.subr.bf16.mxu0 0
    %1385 = vmatpush2.bf16.msra.mxu0 0
    %1386 = vmatprep.subr.bf16.mxu0 %v1104
    %1387 = vmatpush2.bf16.msra.mxu0 %v1103
    %1388 = vmatprep.mubr.bf16.mxu0 %v1313
    %1389 = vmatmul.mubr.bf16.gmra.mxu0 %v67
    %v1390 = vpop.f32.mrf.mxu0
    %v1391 = vadd.f32 %v1350, %v1390
    %v1392 = vpop.f32.mrf.mxu0
    %v1393 = vadd.f32 %v1352, %v1392
    %v1394 = vpop.f32.mrf.mxu0
    %v1395 = vpop.f32.mrf.mxu0
    %1396 = vdwg.mxu0
    %1397 = vmatprep.subr.bf16.mxu0 %v970
    %1398 = vmatpush1.bf16.msra.mxu0 %v969
    %1399 = vmatprep.subr.bf16.mxu0 %v962
    %1400 = vmatpush1.bf16.msra.mxu0 %v961
    %1401 = vmatprep.subr.bf16.mxu0 %v954
    %1402 = vmatpush1.bf16.msra.mxu0 %v953
    %1403 = vmatprep.subr.bf16.mxu0 %v946
    %1404 = vmatpush1.bf16.msra.mxu0 %v945
    %1405 = vmatprep.subr.bf16.mxu0 %v938
    %1406 = vmatpush1.bf16.msra.mxu0 %v937
    %1407 = vmatprep.subr.bf16.mxu0 %v930
    %1408 = vmatpush1.bf16.msra.mxu0 %v929
    %1409 = vmatprep.subr.bf16.mxu0 %v922
    %1410 = vmatpush1.bf16.msra.mxu0 %v921
    %1411 = vmatprep.subr.bf16.mxu0 %v914
    %1412 = vmatpush1.bf16.msra.mxu0 %v913
    %1413 = vmatprep.subr.bf16.mxu0 %v1034
    %1414 = vmatpush2.bf16.msra.mxu0 %v1033
    %1415 = vmatprep.subr.bf16.mxu0 %v1026
    %1416 = vmatpush2.bf16.msra.mxu0 %v1025
    %1417 = vmatprep.subr.bf16.mxu0 %v1018
    %1418 = vmatpush2.bf16.msra.mxu0 %v1017
    %1419 = vmatprep.subr.bf16.mxu0 %v1010
    %1420 = vmatpush2.bf16.msra.mxu0 %v1009
    %1421 = vmatprep.subr.bf16.mxu0 %v1002
    %1422 = vmatpush2.bf16.msra.mxu0 %v1001
    %1423 = vmatprep.subr.bf16.mxu0 %v994
    %1424 = vmatpush2.bf16.msra.mxu0 %v993
    %1425 = vmatprep.subr.bf16.mxu0 %v986
    %1426 = vmatpush2.bf16.msra.mxu0 %v985
    %1427 = vmatprep.subr.bf16.mxu0 %v978
    %1428 = vmatpush2.bf16.msra.mxu0 %v977
    %1429 = vmatprep.mubr.bf16.mxu0 %v66
    %1430 = vmatmul.mubr.bf16.gmra.mxu0 %v65
    %v1431 = vpop.f32.mrf.mxu0
    %v1432 = vadd.f32 %v282, %v1431
    %v1433 = vpop.f32.mrf.mxu0
    %v1434 = vadd.f32 %v286, %v1433
    %v1435 = vpop.f32.mrf.mxu0
    %v1436 = vpop.f32.mrf.mxu0
    %1437 = vdwg.mxu0
    %1438 = vmatprep.subr.bf16.mxu0 %v1098
    %1439 = vmatpush1.bf16.msra.mxu0 %v1097
    %1440 = vmatprep.subr.bf16.mxu0 %v1090
    %1441 = vmatpush1.bf16.msra.mxu0 %v1089
    %1442 = vmatprep.subr.bf16.mxu0 %v1082
    %1443 = vmatpush1.bf16.msra.mxu0 %v1081
    %1444 = vmatprep.subr.bf16.mxu0 %v1074
    %1445 = vmatpush1.bf16.msra.mxu0 %v1073
    %1446 = vmatprep.subr.bf16.mxu0 %v1066
    %1447 = vmatpush1.bf16.msra.mxu0 %v1065
    %1448 = vmatprep.subr.bf16.mxu0 %v1058
    %1449 = vmatpush1.bf16.msra.mxu0 %v1057
    %1450 = vmatprep.subr.bf16.mxu0 %v1050
    %1451 = vmatpush1.bf16.msra.mxu0 %v1049
    %1452 = vmatprep.subr.bf16.mxu0 %v1042
    %1453 = vmatpush1.bf16.msra.mxu0 %v1041
    %1454 = vmatprep.subr.bf16.mxu0 0
    %1455 = vmatpush2.bf16.msra.mxu0 0
    %1456 = vmatprep.subr.bf16.mxu0 0
    %1457 = vmatpush2.bf16.msra.mxu0 0
    %1458 = vmatprep.subr.bf16.mxu0 0
    %1459 = vmatpush2.bf16.msra.mxu0 0
    %1460 = vmatprep.subr.bf16.mxu0 0
    %1461 = vmatpush2.bf16.msra.mxu0 0
    %1462 = vmatprep.subr.bf16.mxu0 0
    %1463 = vmatpush2.bf16.msra.mxu0 0
    %1464 = vmatprep.subr.bf16.mxu0 0
    %1465 = vmatpush2.bf16.msra.mxu0 0
    %1466 = vmatprep.subr.bf16.mxu0 0
    %1467 = vmatpush2.bf16.msra.mxu0 0
    %1468 = vmatprep.subr.bf16.mxu0 %v1106
    %1469 = vmatpush2.bf16.msra.mxu0 %v1105
    %1470 = vmatprep.mubr.bf16.mxu0 %v1313
    %1471 = vmatmul.mubr.bf16.gmra.mxu0 %v67
    %v1472 = vpop.f32.mrf.mxu0
    %v1473 = vadd.f32 %v1432, %v1472
    %v1474 = vpop.f32.mrf.mxu0
    %v1475 = vadd.f32 %v1434, %v1474
    %v1476 = vpop.f32.mrf.mxu0
    %v1477 = vpop.f32.mrf.mxu0
    %1478 = vdwg.mxu0
    %1479 = vmatprep.subr.bf16.mxu0 %v972
    %1480 = vmatpush1.bf16.msra.mxu0 %v971
    %1481 = vmatprep.subr.bf16.mxu0 %v964
    %1482 = vmatpush1.bf16.msra.mxu0 %v963
    %1483 = vmatprep.subr.bf16.mxu0 %v956
    %1484 = vmatpush1.bf16.msra.mxu0 %v955
    %1485 = vmatprep.subr.bf16.mxu0 %v948
    %1486 = vmatpush1.bf16.msra.mxu0 %v947
    %1487 = vmatprep.subr.bf16.mxu0 %v940
    %1488 = vmatpush1.bf16.msra.mxu0 %v939
    %1489 = vmatprep.subr.bf16.mxu0 %v932
    %1490 = vmatpush1.bf16.msra.mxu0 %v931
    %1491 = vmatprep.subr.bf16.mxu0 %v924
    %1492 = vmatpush1.bf16.msra.mxu0 %v923
    %1493 = vmatprep.subr.bf16.mxu0 %v916
    %1494 = vmatpush1.bf16.msra.mxu0 %v915
    %1495 = vmatprep.subr.bf16.mxu0 %v1036
    %1496 = vmatpush2.bf16.msra.mxu0 %v1035
    %1497 = vmatprep.subr.bf16.mxu0 %v1028
    %1498 = vmatpush2.bf16.msra.mxu0 %v1027
    %1499 = vmatprep.subr.bf16.mxu0 %v1020
    %1500 = vmatpush2.bf16.msra.mxu0 %v1019
    %1501 = vmatprep.subr.bf16.mxu0 %v1012
    %1502 = vmatpush2.bf16.msra.mxu0 %v1011
    %1503 = vmatprep.subr.bf16.mxu0 %v1004
    %1504 = vmatpush2.bf16.msra.mxu0 %v1003
    %1505 = vmatprep.subr.bf16.mxu0 %v996
    %1506 = vmatpush2.bf16.msra.mxu0 %v995
    %1507 = vmatprep.subr.bf16.mxu0 %v988
    %1508 = vmatpush2.bf16.msra.mxu0 %v987
    %1509 = vmatprep.subr.bf16.mxu0 %v980
    %1510 = vmatpush2.bf16.msra.mxu0 %v979
    %1511 = vmatprep.mubr.bf16.mxu0 %v66
    %1512 = vmatmul.mubr.bf16.gmra.mxu0 %v65
    %v1513 = vpop.f32.mrf.mxu0
    %v1514 = vadd.f32 %v290, %v1513
    %v1515 = vpop.f32.mrf.mxu0
    %v1516 = vadd.f32 %v294, %v1515
    %v1517 = vpop.f32.mrf.mxu0
    %v1518 = vpop.f32.mrf.mxu0
    %1519 = vdwg.mxu0
    %1520 = vmatprep.subr.bf16.mxu0 %v1100
    %1521 = vmatpush1.bf16.msra.mxu0 %v1099
    %1522 = vmatprep.subr.bf16.mxu0 %v1092
    %1523 = vmatpush1.bf16.msra.mxu0 %v1091
    %1524 = vmatprep.subr.bf16.mxu0 %v1084
    %1525 = vmatpush1.bf16.msra.mxu0 %v1083
    %1526 = vmatprep.subr.bf16.mxu0 %v1076
    %1527 = vmatpush1.bf16.msra.mxu0 %v1075
    %1528 = vmatprep.subr.bf16.mxu0 %v1068
    %1529 = vmatpush1.bf16.msra.mxu0 %v1067
    %1530 = vmatprep.subr.bf16.mxu0 %v1060
    %1531 = vmatpush1.bf16.msra.mxu0 %v1059
    %1532 = vmatprep.subr.bf16.mxu0 %v1052
    %1533 = vmatpush1.bf16.msra.mxu0 %v1051
    %1534 = vmatprep.subr.bf16.mxu0 %v1044
    %1535 = vmatpush1.bf16.msra.mxu0 %v1043
    %1536 = vmatprep.subr.bf16.mxu0 0
    %1537 = vmatpush2.bf16.msra.mxu0 0
    %1538 = vmatprep.subr.bf16.mxu0 0
    %1539 = vmatpush2.bf16.msra.mxu0 0
    %1540 = vmatprep.subr.bf16.mxu0 0
    %1541 = vmatpush2.bf16.msra.mxu0 0
    %1542 = vmatprep.subr.bf16.mxu0 0
    %1543 = vmatpush2.bf16.msra.mxu0 0
    %1544 = vmatprep.subr.bf16.mxu0 0
    %1545 = vmatpush2.bf16.msra.mxu0 0
    %1546 = vmatprep.subr.bf16.mxu0 0
    %1547 = vmatpush2.bf16.msra.mxu0 0
    %1548 = vmatprep.subr.bf16.mxu0 0
    %1549 = vmatpush2.bf16.msra.mxu0 0
    %1550 = vmatprep.subr.bf16.mxu0 %v1108
    %1551 = vmatpush2.bf16.msra.mxu0 %v1107
    %1552 = vmatprep.mubr.bf16.mxu0 %v1313
    %1553 = vmatmul.mubr.bf16.gmra.mxu0 %v67
    %v1554 = vpop.f32.mrf.mxu0
    %v1555 = vadd.f32 %v1514, %v1554
    %v1556 = vpop.f32.mrf.mxu0
    %v1557 = vadd.f32 %v1516, %v1556
    %v1558 = vpop.f32.mrf.mxu0
    %v1559 = vpop.f32.mrf.mxu0
    %1560 = vdwg.mxu0
    %1561 = vmatprep.subr.bf16.mxu0 %v974
    %1562 = vmatpush1.bf16.msra.mxu0 %v973
    %1563 = vmatprep.subr.bf16.mxu0 %v966
    %1564 = vmatpush1.bf16.msra.mxu0 %v965
    %1565 = vmatprep.subr.bf16.mxu0 %v958
    %1566 = vmatpush1.bf16.msra.mxu0 %v957
    %1567 = vmatprep.subr.bf16.mxu0 %v950
    %1568 = vmatpush1.bf16.msra.mxu0 %v949
    %1569 = vmatprep.subr.bf16.mxu0 %v942
    %1570 = vmatpush1.bf16.msra.mxu0 %v941
    %1571 = vmatprep.subr.bf16.mxu0 %v934
    %1572 = vmatpush1.bf16.msra.mxu0 %v933
    %1573 = vmatprep.subr.bf16.mxu0 %v926
    %1574 = vmatpush1.bf16.msra.mxu0 %v925
    %1575 = vmatprep.subr.bf16.mxu0 %v918
    %1576 = vmatpush1.bf16.msra.mxu0 %v917
    %1577 = vmatprep.subr.bf16.mxu0 %v1038
    %1578 = vmatpush2.bf16.msra.mxu0 %v1037
    %1579 = vmatprep.subr.bf16.mxu0 %v1030
    %1580 = vmatpush2.bf16.msra.mxu0 %v1029
    %1581 = vmatprep.subr.bf16.mxu0 %v1022
    %1582 = vmatpush2.bf16.msra.mxu0 %v1021
    %1583 = vmatprep.subr.bf16.mxu0 %v1014
    %1584 = vmatpush2.bf16.msra.mxu0 %v1013
    %1585 = vmatprep.subr.bf16.mxu0 %v1006
    %1586 = vmatpush2.bf16.msra.mxu0 %v1005
    %1587 = vmatprep.subr.bf16.mxu0 %v998
    %1588 = vmatpush2.bf16.msra.mxu0 %v997
    %1589 = vmatprep.subr.bf16.mxu0 %v990
    %1590 = vmatpush2.bf16.msra.mxu0 %v989
    %1591 = vmatprep.subr.bf16.mxu0 %v982
    %1592 = vmatpush2.bf16.msra.mxu0 %v981
    %1593 = vmatprep.mubr.bf16.mxu0 %v66
    %1594 = vmatmul.mubr.bf16.gmra.mxu0 %v65
    %v1595 = vpop.f32.mrf.mxu0
    %v1596 = vadd.f32 %v298, %v1595
    %v1597 = vpop.f32.mrf.mxu0
    %v1598 = vadd.f32 %v302, %v1597
    %v1599 = vpop.f32.mrf.mxu0
    %v1600 = vpop.f32.mrf.mxu0
    %1601 = vdwg.mxu0
    %1602 = vmatprep.subr.bf16.mxu0 %v1102
    %1603 = vmatpush1.bf16.msra.mxu0 %v1101
    %1604 = vmatprep.subr.bf16.mxu0 %v1094
    %1605 = vmatpush1.bf16.msra.mxu0 %v1093
    %1606 = vmatprep.subr.bf16.mxu0 %v1086
    %1607 = vmatpush1.bf16.msra.mxu0 %v1085
    %1608 = vmatprep.subr.bf16.mxu0 %v1078
    %1609 = vmatpush1.bf16.msra.mxu0 %v1077
    %1610 = vmatprep.subr.bf16.mxu0 %v1070
    %1611 = vmatpush1.bf16.msra.mxu0 %v1069
    %1612 = vmatprep.subr.bf16.mxu0 %v1062
    %1613 = vmatpush1.bf16.msra.mxu0 %v1061
    %1614 = vmatprep.subr.bf16.mxu0 %v1054
    %1615 = vmatpush1.bf16.msra.mxu0 %v1053
    %1616 = vmatprep.subr.bf16.mxu0 %v1046
    %1617 = vmatpush1.bf16.msra.mxu0 %v1045
    %1618 = vmatprep.subr.bf16.mxu0 0
    %1619 = vmatpush2.bf16.msra.mxu0 0
    %1620 = vmatprep.subr.bf16.mxu0 0
    %1621 = vmatpush2.bf16.msra.mxu0 0
    %1622 = vmatprep.subr.bf16.mxu0 0
    %1623 = vmatpush2.bf16.msra.mxu0 0
    %1624 = vmatprep.subr.bf16.mxu0 0
    %1625 = vmatpush2.bf16.msra.mxu0 0
    %1626 = vmatprep.subr.bf16.mxu0 0
    %1627 = vmatpush2.bf16.msra.mxu0 0
    %1628 = vmatprep.subr.bf16.mxu0 0
    %1629 = vmatpush2.bf16.msra.mxu0 0
    %1630 = vmatprep.subr.bf16.mxu0 0
    %1631 = vmatpush2.bf16.msra.mxu0 0
    %1632 = vmatprep.subr.bf16.mxu0 %v1110
    %1633 = vmatpush2.bf16.msra.mxu0 %v1109
    %1634 = vmatprep.mubr.bf16.mxu0 %v1313
    %1635 = vmatmul.mubr.bf16.gmra.mxu0 %v67
    %v1636 = vpop.f32.mrf.mxu0
    %v1637 = vadd.f32 %v1596, %v1636
    %v1638 = vpop.f32.mrf.mxu0
    %v1639 = vadd.f32 %v1598, %v1638
    %v1640 = vpop.f32.mrf.mxu0
    %v1641 = vpop.f32.mrf.mxu0
    %1642 = vdwg.mxu0
    %v1643 = vmax.f32 %v1391, 0.0
    %v1644 = vmax.f32 %v1393, 0.0
    %v1645 = vmax.f32 %v1473, 0.0
    %v1646 = vmax.f32 %v1475, 0.0
    %v1647 = vmax.f32 %v1555, 0.0
    %v1648 = vmax.f32 %v1557, 0.0
    %v1649 = vmax.f32 %v1637, 0.0
    %v1650 = vmax.f32 %v1639, 0.0
    %v1651 = vpack.c.bf16 %v1643, %v1643
    %v1652 = vpack.c.bf16 %v1644, %v1644
    %v1653 = vpack.c.bf16 %v1645, %v1645
    %v1654 = vpack.c.bf16 %v1646, %v1646
    %v1655 = vpack.c.bf16 %v1647, %v1647
    %v1656 = vpack.c.bf16 %v1648, %v1648
    %v1657 = vpack.c.bf16 %v1649, %v1649
    %v1658 = vpack.c.bf16 %v1650, %v1650
    %v1659 = vld [vmem:[#allocation4] sm:$0xf]
    %v1660 = vld [vmem:[#allocation4 + $0x4] sm:$0xf]
    %v1661 = vld [vmem:[#allocation4 + $0x8] sm:$0xf]
    %v1662 = vld [vmem:[#allocation4 + $0xc] sm:$0xf]
    %v1663 = vld [vmem:[#allocation4 + $0x10] sm:$0xf]
    %v1664 = vld [vmem:[#allocation4 + $0x14] sm:$0xf]
    %v1665 = vld [vmem:[#allocation4 + $0x18] sm:$0xf]
    %v1666 = vld [vmem:[#allocation4 + $0x1c] sm:$0xf]
    %v1667 = vld [vmem:[#allocation4 + $0x20] sm:$0xf]
    %v1668 = vld [vmem:[#allocation4 + $0x24] sm:$0xf]
    %v1669 = vld [vmem:[#allocation4 + $0x28] sm:$0xf]
    %v1670 = vld [vmem:[#allocation4 + $0x2c] sm:$0xf]
    %v1671 = vld [vmem:[#allocation4 + $0x30] sm:$0xf]
    %v1672 = vld [vmem:[#allocation4 + $0x34] sm:$0xf]
    %v1673 = vld [vmem:[#allocation4 + $0x38] sm:$0xf]
    %v1674 = vld [vmem:[#allocation4 + $0x3c] sm:$0xf]
    %v1675 = vld [vmem:[#allocation4 + $0x40] sm:$0xf]
    %v1676 = vld [vmem:[#allocation4 + $0x44] sm:$0xf]
    %v1677 = vld [vmem:[#allocation4 + $0x48] sm:$0xf]
    %v1678 = vld [vmem:[#allocation4 + $0x4c] sm:$0xf]
    %v1679 = vld [vmem:[#allocation4 + $0x50] sm:$0xf]
    %v1680 = vld [vmem:[#allocation4 + $0x54] sm:$0xf]
    %v1681 = vld [vmem:[#allocation4 + $0x58] sm:$0xf]
    %v1682 = vld [vmem:[#allocation4 + $0x5c] sm:$0xf]
    %v1683 = vld [vmem:[#allocation4 + $0x60] sm:$0xf]
    %v1684 = vld [vmem:[#allocation4 + $0x64] sm:$0xf]
    %v1685 = vld [vmem:[#allocation4 + $0x68] sm:$0xf]
    %v1686 = vld [vmem:[#allocation4 + $0x6c] sm:$0xf]
    %v1687 = vld [vmem:[#allocation4 + $0x70] sm:$0xf]
    %v1688 = vld [vmem:[#allocation4 + $0x74] sm:$0xf]
    %v1689 = vld [vmem:[#allocation4 + $0x78] sm:$0xf]
    %v1690 = vld [vmem:[#allocation4 + $0x7c] sm:$0xf]
    %v1691 = vld [vmem:[#allocation4 + $0x80] sm:$0xf]
    %v1692 = vld [vmem:[#allocation4 + $0x84] sm:$0xf]
    %v1693 = vld [vmem:[#allocation4 + $0x88] sm:$0xf]
    %v1694 = vld [vmem:[#allocation4 + $0x8c] sm:$0xf]
    %v1695 = vld [vmem:[#allocation4 + $0x90] sm:$0xf]
    %v1696 = vld [vmem:[#allocation4 + $0x94] sm:$0xf]
    %v1697 = vld [vmem:[#allocation4 + $0x98] sm:$0xf]
    %v1698 = vld [vmem:[#allocation4 + $0x9c] sm:$0xf]
    %v1699 = vld [vmem:[#allocation4 + $0xa0] sm:$0xf]
    %v1700 = vld [vmem:[#allocation4 + $0xa4] sm:$0xf]
    %v1701 = vld [vmem:[#allocation4 + $0xa8] sm:$0xf]
    %v1702 = vld [vmem:[#allocation4 + $0xac] sm:$0xf]
    %v1703 = vld [vmem:[#allocation4 + $0xb0] sm:$0xf]
    %v1704 = vld [vmem:[#allocation4 + $0xb4] sm:$0xf]
    %v1705 = vld [vmem:[#allocation4 + $0xb8] sm:$0xf]
    %v1706 = vld [vmem:[#allocation4 + $0xbc] sm:$0xf]
    %v1707 = vld [vmem:[#allocation4 + $0xc0] sm:$0xf]
    %v1708 = vld [vmem:[#allocation4 + $0xc4] sm:$0xf]
    %v1709 = vld [vmem:[#allocation4 + $0xc8] sm:$0xf]
    %v1710 = vld [vmem:[#allocation4 + $0xcc] sm:$0xf]
    %v1711 = vld [vmem:[#allocation4 + $0xd0] sm:$0xf]
    %v1712 = vld [vmem:[#allocation4 + $0xd4] sm:$0xf]
    %v1713 = vld [vmem:[#allocation4 + $0xd8] sm:$0xf]
    %v1714 = vld [vmem:[#allocation4 + $0xdc] sm:$0xf]
    %v1715 = vld [vmem:[#allocation4 + $0xe0] sm:$0xf]
    %v1716 = vld [vmem:[#allocation4 + $0xe4] sm:$0xf]
    %v1717 = vld [vmem:[#allocation4 + $0xe8] sm:$0xf]
    %v1718 = vld [vmem:[#allocation4 + $0xec] sm:$0xf]
    %v1719 = vld [vmem:[#allocation4 + $0xf0] sm:$0xf]
    %v1720 = vld [vmem:[#allocation4 + $0xf4] sm:$0xf]
    %v1721 = vld [vmem:[#allocation4 + $0xf8] sm:$0xf]
    %v1722 = vld [vmem:[#allocation4 + $0xfc] sm:$0xf]
    %v1723 = vld [vmem:[#allocation4 + $0x100] sm:$0xf]
    %v1724 = vld [vmem:[#allocation4 + $0x104] sm:$0xf]
    %v1725 = vld [vmem:[#allocation4 + $0x108] sm:$0xf]
    %v1726 = vld [vmem:[#allocation4 + $0x10c] sm:$0xf]
    %v1727 = vld [vmem:[#allocation4 + $0x110] sm:$0xf]
    %v1728 = vld [vmem:[#allocation4 + $0x114] sm:$0xf]
    %v1729 = vld [vmem:[#allocation4 + $0x118] sm:$0xf]
    %v1730 = vld [vmem:[#allocation4 + $0x11c] sm:$0xf]
    %v1731 = vld [vmem:[#allocation4 + $0x120] sm:$0xf]
    %v1732 = vld [vmem:[#allocation4 + $0x124] sm:$0xf]
    %v1733 = vld [vmem:[#allocation4 + $0x128] sm:$0xf]
    %v1734 = vld [vmem:[#allocation4 + $0x12c] sm:$0xf]
    %v1735 = vld [vmem:[#allocation4 + $0x130] sm:$0xf]
    %v1736 = vld [vmem:[#allocation4 + $0x134] sm:$0xf]
    %v1737 = vld [vmem:[#allocation4 + $0x138] sm:$0xf]
    %v1738 = vld [vmem:[#allocation4 + $0x13c] sm:$0xf]
    %v1739 = vld [vmem:[#allocation4 + $0x140] sm:$0xf]
    %v1740 = vld [vmem:[#allocation4 + $0x144] sm:$0xf]
    %v1741 = vld [vmem:[#allocation4 + $0x148] sm:$0xf]
    %v1742 = vld [vmem:[#allocation4 + $0x14c] sm:$0xf]
    %v1743 = vld [vmem:[#allocation4 + $0x150] sm:$0xf]
    %v1744 = vld [vmem:[#allocation4 + $0x154] sm:$0xf]
    %v1745 = vld [vmem:[#allocation4 + $0x158] sm:$0xf]
    %v1746 = vld [vmem:[#allocation4 + $0x15c] sm:$0xf]
    %v1747 = vld [vmem:[#allocation4 + $0x160] sm:$0xf]
    %v1748 = vld [vmem:[#allocation4 + $0x164] sm:$0xf]
    %v1749 = vld [vmem:[#allocation4 + $0x168] sm:$0xf]
    %v1750 = vld [vmem:[#allocation4 + $0x16c] sm:$0xf]
    %v1751 = vld [vmem:[#allocation4 + $0x170] sm:$0xf]
    %v1752 = vld [vmem:[#allocation4 + $0x174] sm:$0xf]
    %v1753 = vld [vmem:[#allocation4 + $0x178] sm:$0xf]
    %v1754 = vld [vmem:[#allocation4 + $0x17c] sm:$0xf]
    %v1755 = vld [vmem:[#allocation4 + $0x180] sm:$0xf]
    %v1756 = vld [vmem:[#allocation4 + $0x184] sm:$0xf]
    %v1757 = vld [vmem:[#allocation4 + $0x188] sm:$0xf]
    %v1758 = vld [vmem:[#allocation4 + $0x18c] sm:$0xf]
    %v1759 = vld [vmem:[#allocation4 + $0x190] sm:$0xf]
    %v1760 = vld [vmem:[#allocation4 + $0x194] sm:$0xf]
    %v1761 = vld [vmem:[#allocation4 + $0x198] sm:$0xf]
    %v1762 = vld [vmem:[#allocation4 + $0x19c] sm:$0xf]
    %v1763 = vld [vmem:[#allocation4 + $0x1a0] sm:$0xf]
    %v1764 = vld [vmem:[#allocation4 + $0x1a4] sm:$0xf]
    %v1765 = vld [vmem:[#allocation4 + $0x1a8] sm:$0xf]
    %v1766 = vld [vmem:[#allocation4 + $0x1ac] sm:$0xf]
    %v1767 = vld [vmem:[#allocation4 + $0x1b0] sm:$0xf]
    %v1768 = vld [vmem:[#allocation4 + $0x1b4] sm:$0xf]
    %v1769 = vld [vmem:[#allocation4 + $0x1b8] sm:$0xf]
    %v1770 = vld [vmem:[#allocation4 + $0x1bc] sm:$0xf]
    %v1771 = vld [vmem:[#allocation4 + $0x1c0] sm:$0xf]
    %v1772 = vld [vmem:[#allocation4 + $0x1c4] sm:$0xf]
    %v1773 = vld [vmem:[#allocation4 + $0x1c8] sm:$0xf]
    %v1774 = vld [vmem:[#allocation4 + $0x1cc] sm:$0xf]
    %v1775 = vld [vmem:[#allocation4 + $0x1d0] sm:$0xf]
    %v1776 = vld [vmem:[#allocation4 + $0x1d4] sm:$0xf]
    %v1777 = vld [vmem:[#allocation4 + $0x1d8] sm:$0xf]
    %v1778 = vld [vmem:[#allocation4 + $0x1dc] sm:$0xf]
    %v1779 = vld [vmem:[#allocation4 + $0x1e0] sm:$0xf]
    %v1780 = vld [vmem:[#allocation4 + $0x1e4] sm:$0xf]
    %v1781 = vld [vmem:[#allocation4 + $0x1e8] sm:$0xf]
    %v1782 = vld [vmem:[#allocation4 + $0x1ec] sm:$0xf]
    %v1783 = vld [vmem:[#allocation4 + $0x1f0] sm:$0xf]
    %v1784 = vld [vmem:[#allocation4 + $0x1f4] sm:$0xf]
    %v1785 = vld [vmem:[#allocation4 + $0x1f8] sm:$0xf]
    %v1786 = vld [vmem:[#allocation4 + $0x1fc] sm:$0xf]
    %v1787 = vld [vmem:[%s4] sm:$0x1]
    %v1789 = vlaneseq
    %v1790 = vshrl.u32 %v1789, 7
    %v1791 = vsub.s32 0, %v1790
    %v1792 = vrot.slane %v1787, %v1791
    %v1922 = vunpack.c.l.b16 %v1659
    %v1923 = vunpack.c.l.b16 %v1660
    %v1924 = vunpack.c.l.b16 %v1661
    %v1925 = vunpack.c.l.b16 %v1662
    %v1926 = vunpack.c.l.b16 %v1663
    %v1927 = vunpack.c.l.b16 %v1664
    %v1928 = vunpack.c.l.b16 %v1665
    %v1929 = vunpack.c.l.b16 %v1666
    %v1930 = vunpack.c.l.b16 %v1667
    %v1931 = vunpack.c.l.b16 %v1668
    %v1932 = vunpack.c.l.b16 %v1669
    %v1933 = vunpack.c.l.b16 %v1670
    %v1934 = vunpack.c.l.b16 %v1671
    %v1935 = vunpack.c.l.b16 %v1672
    %v1936 = vunpack.c.l.b16 %v1673
    %v1937 = vunpack.c.l.b16 %v1674
    %v1938 = vunpack.c.l.b16 %v1675
    %v1939 = vunpack.c.l.b16 %v1676
    %v1940 = vunpack.c.l.b16 %v1677
    %v1941 = vunpack.c.l.b16 %v1678
    %v1942 = vunpack.c.l.b16 %v1679
    %v1943 = vunpack.c.l.b16 %v1680
    %v1944 = vunpack.c.l.b16 %v1681
    %v1945 = vunpack.c.l.b16 %v1682
    %v1946 = vunpack.c.l.b16 %v1683
    %v1947 = vunpack.c.l.b16 %v1684
    %v1948 = vunpack.c.l.b16 %v1685
    %v1949 = vunpack.c.l.b16 %v1686
    %v1950 = vunpack.c.l.b16 %v1687
    %v1951 = vunpack.c.l.b16 %v1688
    %v1952 = vunpack.c.l.b16 %v1689
    %v1953 = vunpack.c.l.b16 %v1690
    %v1954 = vunpack.c.l.b16 %v1691
    %v1955 = vunpack.c.l.b16 %v1692
    %v1956 = vunpack.c.l.b16 %v1693
    %v1957 = vunpack.c.l.b16 %v1694
    %v1958 = vunpack.c.l.b16 %v1695
    %v1959 = vunpack.c.l.b16 %v1696
    %v1960 = vunpack.c.l.b16 %v1697
    %v1961 = vunpack.c.l.b16 %v1698
    %v1962 = vunpack.c.l.b16 %v1699
    %v1963 = vunpack.c.l.b16 %v1700
    %v1964 = vunpack.c.l.b16 %v1701
    %v1965 = vunpack.c.l.b16 %v1702
    %v1966 = vunpack.c.l.b16 %v1703
    %v1967 = vunpack.c.l.b16 %v1704
    %v1968 = vunpack.c.l.b16 %v1705
    %v1969 = vunpack.c.l.b16 %v1706
    %v1970 = vunpack.c.l.b16 %v1707
    %v1971 = vunpack.c.l.b16 %v1708
    %v1972 = vunpack.c.l.b16 %v1709
    %v1973 = vunpack.c.l.b16 %v1710
    %v1974 = vunpack.c.l.b16 %v1711
    %v1975 = vunpack.c.l.b16 %v1712
    %v1976 = vunpack.c.l.b16 %v1713
    %v1977 = vunpack.c.l.b16 %v1714
    %v1978 = vunpack.c.l.b16 %v1715
    %v1979 = vunpack.c.l.b16 %v1716
    %v1980 = vunpack.c.l.b16 %v1717
    %v1981 = vunpack.c.l.b16 %v1718
    %v1982 = vunpack.c.l.b16 %v1719
    %v1983 = vunpack.c.l.b16 %v1720
    %v1984 = vunpack.c.l.b16 %v1721
    %v1985 = vunpack.c.l.b16 %v1722
    %v1986 = vunpack.c.l.b16 %v1723
    %v1987 = vunpack.c.l.b16 %v1724
    %v1988 = vunpack.c.l.b16 %v1725
    %v1989 = vunpack.c.l.b16 %v1726
    %v1990 = vunpack.c.l.b16 %v1727
    %v1991 = vunpack.c.l.b16 %v1728
    %v1992 = vunpack.c.l.b16 %v1729
    %v1993 = vunpack.c.l.b16 %v1730
    %v1994 = vunpack.c.l.b16 %v1731
    %v1995 = vunpack.c.l.b16 %v1732
    %v1996 = vunpack.c.l.b16 %v1733
    %v1997 = vunpack.c.l.b16 %v1734
    %v1998 = vunpack.c.l.b16 %v1735
    %v1999 = vunpack.c.l.b16 %v1736
    %v2000 = vunpack.c.l.b16 %v1737
    %v2001 = vunpack.c.l.b16 %v1738
    %v2002 = vunpack.c.l.b16 %v1739
    %v2003 = vunpack.c.l.b16 %v1740
    %v2004 = vunpack.c.l.b16 %v1741
    %v2005 = vunpack.c.l.b16 %v1742
    %v2006 = vunpack.c.l.b16 %v1743
    %v2007 = vunpack.c.l.b16 %v1744
    %v2008 = vunpack.c.l.b16 %v1745
    %v2009 = vunpack.c.l.b16 %v1746
    %v2010 = vunpack.c.l.b16 %v1747
    %v2011 = vunpack.c.l.b16 %v1748
    %v2012 = vunpack.c.l.b16 %v1749
    %v2013 = vunpack.c.l.b16 %v1750
    %v2014 = vunpack.c.l.b16 %v1751
    %v2015 = vunpack.c.l.b16 %v1752
    %v2016 = vunpack.c.l.b16 %v1753
    %v2017 = vunpack.c.l.b16 %v1754
    %v2018 = vunpack.c.l.b16 %v1755
    %v2019 = vunpack.c.l.b16 %v1756
    %v2020 = vunpack.c.l.b16 %v1757
    %v2021 = vunpack.c.l.b16 %v1758
    %v2022 = vunpack.c.l.b16 %v1759
    %v2023 = vunpack.c.l.b16 %v1760
    %v2024 = vunpack.c.l.b16 %v1761
    %v2025 = vunpack.c.l.b16 %v1762
    %v2026 = vunpack.c.l.b16 %v1763
    %v2027 = vunpack.c.l.b16 %v1764
    %v2028 = vunpack.c.l.b16 %v1765
    %v2029 = vunpack.c.l.b16 %v1766
    %v2030 = vunpack.c.l.b16 %v1767
    %v2031 = vunpack.c.l.b16 %v1768
    %v2032 = vunpack.c.l.b16 %v1769
    %v2033 = vunpack.c.l.b16 %v1770
    %v2034 = vunpack.c.l.b16 %v1771
    %v2035 = vunpack.c.l.b16 %v1772
    %v2036 = vunpack.c.l.b16 %v1773
    %v2037 = vunpack.c.l.b16 %v1774
    %v2038 = vunpack.c.l.b16 %v1775
    %v2039 = vunpack.c.l.b16 %v1776
    %v2040 = vunpack.c.l.b16 %v1777
    %v2041 = vunpack.c.l.b16 %v1778
    %v2042 = vunpack.c.l.b16 %v1779
    %v2043 = vunpack.c.l.b16 %v1780
    %v2044 = vunpack.c.l.b16 %v1781
    %v2045 = vunpack.c.l.b16 %v1782
    %v2046 = vunpack.c.l.b16 %v1783
    %v2047 = vunpack.c.l.b16 %v1784
    %v2048 = vunpack.c.l.b16 %v1785
    %v2049 = vunpack.c.l.b16 %v1786
    %v2050 = vpack.c.b16 %v1923, %v1922
    %v2051 = vpack.c.b16 %v1925, %v1924
    %v2052 = vpack.c.b16 %v1927, %v1926
    %v2053 = vpack.c.b16 %v1929, %v1928
    %v2054 = vpack.c.b16 %v1931, %v1930
    %v2055 = vpack.c.b16 %v1933, %v1932
    %v2056 = vpack.c.b16 %v1935, %v1934
    %v2057 = vpack.c.b16 %v1937, %v1936
    %v2058 = vpack.c.b16 %v1939, %v1938
    %v2059 = vpack.c.b16 %v1941, %v1940
    %v2060 = vpack.c.b16 %v1943, %v1942
    %v2061 = vpack.c.b16 %v1945, %v1944
    %v2062 = vpack.c.b16 %v1947, %v1946
    %v2063 = vpack.c.b16 %v1949, %v1948
    %v2064 = vpack.c.b16 %v1951, %v1950
    %v2065 = vpack.c.b16 %v1953, %v1952
    %v2066 = vpack.c.b16 %v1955, %v1954
    %v2067 = vpack.c.b16 %v1957, %v1956
    %v2068 = vpack.c.b16 %v1959, %v1958
    %v2069 = vpack.c.b16 %v1961, %v1960
    %v2070 = vpack.c.b16 %v1963, %v1962
    %v2071 = vpack.c.b16 %v1965, %v1964
    %v2072 = vpack.c.b16 %v1967, %v1966
    %v2073 = vpack.c.b16 %v1969, %v1968
    %v2074 = vpack.c.b16 %v1971, %v1970
    %v2075 = vpack.c.b16 %v1973, %v1972
    %v2076 = vpack.c.b16 %v1975, %v1974
    %v2077 = vpack.c.b16 %v1977, %v1976
    %v2078 = vpack.c.b16 %v1979, %v1978
    %v2079 = vpack.c.b16 %v1981, %v1980
    %v2080 = vpack.c.b16 %v1983, %v1982
    %v2081 = vpack.c.b16 %v1985, %v1984
    %v2082 = vpack.c.b16 %v1987, %v1986
    %v2083 = vpack.c.b16 %v1989, %v1988
    %v2084 = vpack.c.b16 %v1991, %v1990
    %v2085 = vpack.c.b16 %v1993, %v1992
    %v2086 = vpack.c.b16 %v1995, %v1994
    %v2087 = vpack.c.b16 %v1997, %v1996
    %v2088 = vpack.c.b16 %v1999, %v1998
    %v2089 = vpack.c.b16 %v2001, %v2000
    %v2090 = vpack.c.b16 %v2003, %v2002
    %v2091 = vpack.c.b16 %v2005, %v2004
    %v2092 = vpack.c.b16 %v2007, %v2006
    %v2093 = vpack.c.b16 %v2009, %v2008
    %v2094 = vpack.c.b16 %v2011, %v2010
    %v2095 = vpack.c.b16 %v2013, %v2012
    %v2096 = vpack.c.b16 %v2015, %v2014
    %v2097 = vpack.c.b16 %v2017, %v2016
    %v2098 = vpack.c.b16 %v2019, %v2018
    %v2099 = vpack.c.b16 %v2021, %v2020
    %v2100 = vpack.c.b16 %v2023, %v2022
    %v2101 = vpack.c.b16 %v2025, %v2024
    %v2102 = vpack.c.b16 %v2027, %v2026
    %v2103 = vpack.c.b16 %v2029, %v2028
    %v2104 = vpack.c.b16 %v2031, %v2030
    %v2105 = vpack.c.b16 %v2033, %v2032
    %v2106 = vpack.c.b16 %v2035, %v2034
    %v2107 = vpack.c.b16 %v2037, %v2036
    %v2108 = vpack.c.b16 %v2039, %v2038
    %v2109 = vpack.c.b16 %v2041, %v2040
    %v2110 = vpack.c.b16 %v2043, %v2042
    %v2111 = vpack.c.b16 %v2045, %v2044
    %v2112 = vpack.c.b16 %v2047, %v2046
    %v2113 = vpack.c.b16 %v2049, %v2048
    %2178 = vmatprep.subr.bf16.mxu0 0
    %2179 = vmatpush1.bf16.msra.mxu0 %v2057
    %2180 = vmatprep.subr.bf16.mxu0 0
    %2181 = vmatpush1.bf16.msra.mxu0 %v2056
    %2182 = vmatprep.subr.bf16.mxu0 0
    %2183 = vmatpush1.bf16.msra.mxu0 %v2055
    %2184 = vmatprep.subr.bf16.mxu0 0
    %2185 = vmatpush1.bf16.msra.mxu0 %v2054
    %2186 = vmatprep.subr.bf16.mxu0 0
    %2187 = vmatpush1.bf16.msra.mxu0 %v2053
    %2188 = vmatprep.subr.bf16.mxu0 0
    %2189 = vmatpush1.bf16.msra.mxu0 %v2052
    %2190 = vmatprep.subr.bf16.mxu0 0
    %2191 = vmatpush1.bf16.msra.mxu0 %v2051
    %2192 = vmatprep.subr.bf16.mxu0 0
    %2193 = vmatpush1.bf16.msra.mxu0 %v2050
    %2194 = vmatprep.subr.bf16.mxu0 0
    %2195 = vmatpush2.bf16.msra.mxu0 %v2065
    %2196 = vmatprep.subr.bf16.mxu0 0
    %2197 = vmatpush2.bf16.msra.mxu0 %v2064
    %2198 = vmatprep.subr.bf16.mxu0 0
    %2199 = vmatpush2.bf16.msra.mxu0 %v2063
    %2200 = vmatprep.subr.bf16.mxu0 0
    %2201 = vmatpush2.bf16.msra.mxu0 %v2062
    %2202 = vmatprep.subr.bf16.mxu0 0
    %2203 = vmatpush2.bf16.msra.mxu0 %v2061
    %2204 = vmatprep.subr.bf16.mxu0 0
    %2205 = vmatpush2.bf16.msra.mxu0 %v2060
    %2206 = vmatprep.subr.bf16.mxu0 0
    %2207 = vmatpush2.bf16.msra.mxu0 %v2059
    %2208 = vmatprep.subr.bf16.mxu0 0
    %2209 = vmatpush2.bf16.msra.mxu0 %v2058
    %2210 = vmatprep.mubr.bf16.mxu0 %v1652
    %2211 = vmatmul.mubr.bf16.gmra.mxu0 %v1651
    %v2212 = vpop.f32.mrf.mxu0
    %v2213 = vadd.f32 %v1792, %v2212
    %v2214 = vpop.f32.mrf.mxu0
    %v2215 = vpop.f32.mrf.mxu0
    %v2216 = vpop.f32.mrf.mxu0
    %2217 = vdwg.mxu0
    %2218 = vmatprep.subr.bf16.mxu0 0
    %2219 = vmatpush1.bf16.msra.mxu0 %v2073
    %2220 = vmatprep.subr.bf16.mxu0 0
    %2221 = vmatpush1.bf16.msra.mxu0 %v2072
    %2222 = vmatprep.subr.bf16.mxu0 0
    %2223 = vmatpush1.bf16.msra.mxu0 %v2071
    %2224 = vmatprep.subr.bf16.mxu0 0
    %2225 = vmatpush1.bf16.msra.mxu0 %v2070
    %2226 = vmatprep.subr.bf16.mxu0 0
    %2227 = vmatpush1.bf16.msra.mxu0 %v2069
    %2228 = vmatprep.subr.bf16.mxu0 0
    %2229 = vmatpush1.bf16.msra.mxu0 %v2068
    %2230 = vmatprep.subr.bf16.mxu0 0
    %2231 = vmatpush1.bf16.msra.mxu0 %v2067
    %2232 = vmatprep.subr.bf16.mxu0 0
    %2233 = vmatpush1.bf16.msra.mxu0 %v2066
    %2234 = vmatprep.subr.bf16.mxu0 0
    %2235 = vmatpush2.bf16.msra.mxu0 %v2081
    %2236 = vmatprep.subr.bf16.mxu0 0
    %2237 = vmatpush2.bf16.msra.mxu0 %v2080
    %2238 = vmatprep.subr.bf16.mxu0 0
    %2239 = vmatpush2.bf16.msra.mxu0 %v2079
    %2240 = vmatprep.subr.bf16.mxu0 0
    %2241 = vmatpush2.bf16.msra.mxu0 %v2078
    %2242 = vmatprep.subr.bf16.mxu0 0
    %2243 = vmatpush2.bf16.msra.mxu0 %v2077
    %2244 = vmatprep.subr.bf16.mxu0 0
    %2245 = vmatpush2.bf16.msra.mxu0 %v2076
    %2246 = vmatprep.subr.bf16.mxu0 0
    %2247 = vmatpush2.bf16.msra.mxu0 %v2075
    %2248 = vmatprep.subr.bf16.mxu0 0
    %2249 = vmatpush2.bf16.msra.mxu0 %v2074
    %2250 = vmatprep.mubr.bf16.mxu0 %v1654
    %2251 = vmatmul.mubr.bf16.gmra.mxu0 %v1653
    %v2252 = vpop.f32.mrf.mxu0
    %v2253 = vadd.f32 %v2213, %v2252
    %v2254 = vpop.f32.mrf.mxu0
    %v2255 = vpop.f32.mrf.mxu0
    %v2256 = vpop.f32.mrf.mxu0
    %2257 = vdwg.mxu0
    %2258 = vmatprep.subr.bf16.mxu0 0
    %2259 = vmatpush1.bf16.msra.mxu0 %v2089
    %2260 = vmatprep.subr.bf16.mxu0 0
    %2261 = vmatpush1.bf16.msra.mxu0 %v2088
    %2262 = vmatprep.subr.bf16.mxu0 0
    %2263 = vmatpush1.bf16.msra.mxu0 %v2087
    %2264 = vmatprep.subr.bf16.mxu0 0
    %2265 = vmatpush1.bf16.msra.mxu0 %v2086
    %2266 = vmatprep.subr.bf16.mxu0 0
    %2267 = vmatpush1.bf16.msra.mxu0 %v2085
    %2268 = vmatprep.subr.bf16.mxu0 0
    %2269 = vmatpush1.bf16.msra.mxu0 %v2084
    %2270 = vmatprep.subr.bf16.mxu0 0
    %2271 = vmatpush1.bf16.msra.mxu0 %v2083
    %2272 = vmatprep.subr.bf16.mxu0 0
    %2273 = vmatpush1.bf16.msra.mxu0 %v2082
    %2274 = vmatprep.subr.bf16.mxu0 0
    %2275 = vmatpush2.bf16.msra.mxu0 %v2097
    %2276 = vmatprep.subr.bf16.mxu0 0
    %2277 = vmatpush2.bf16.msra.mxu0 %v2096
    %2278 = vmatprep.subr.bf16.mxu0 0
    %2279 = vmatpush2.bf16.msra.mxu0 %v2095
    %2280 = vmatprep.subr.bf16.mxu0 0
    %2281 = vmatpush2.bf16.msra.mxu0 %v2094
    %2282 = vmatprep.subr.bf16.mxu0 0
    %2283 = vmatpush2.bf16.msra.mxu0 %v2093
    %2284 = vmatprep.subr.bf16.mxu0 0
    %2285 = vmatpush2.bf16.msra.mxu0 %v2092
    %2286 = vmatprep.subr.bf16.mxu0 0
    %2287 = vmatpush2.bf16.msra.mxu0 %v2091
    %2288 = vmatprep.subr.bf16.mxu0 0
    %2289 = vmatpush2.bf16.msra.mxu0 %v2090
    %2290 = vmatprep.mubr.bf16.mxu0 %v1656
    %2291 = vmatmul.mubr.bf16.gmra.mxu0 %v1655
    %v2292 = vpop.f32.mrf.mxu0
    %v2293 = vadd.f32 %v2253, %v2292
    %v2294 = vpop.f32.mrf.mxu0
    %v2295 = vpop.f32.mrf.mxu0
    %v2296 = vpop.f32.mrf.mxu0
    %2297 = vdwg.mxu0
    %2298 = vmatprep.subr.bf16.mxu0 0
    %2299 = vmatpush1.bf16.msra.mxu0 %v2105
    %2300 = vmatprep.subr.bf16.mxu0 0
    %2301 = vmatpush1.bf16.msra.mxu0 %v2104
    %2302 = vmatprep.subr.bf16.mxu0 0
    %2303 = vmatpush1.bf16.msra.mxu0 %v2103
    %2304 = vmatprep.subr.bf16.mxu0 0
    %2305 = vmatpush1.bf16.msra.mxu0 %v2102
    %2306 = vmatprep.subr.bf16.mxu0 0
    %2307 = vmatpush1.bf16.msra.mxu0 %v2101
    %2308 = vmatprep.subr.bf16.mxu0 0
    %2309 = vmatpush1.bf16.msra.mxu0 %v2100
    %2310 = vmatprep.subr.bf16.mxu0 0
    %2311 = vmatpush1.bf16.msra.mxu0 %v2099
    %2312 = vmatprep.subr.bf16.mxu0 0
    %2313 = vmatpush1.bf16.msra.mxu0 %v2098
    %2314 = vmatprep.subr.bf16.mxu0 0
    %2315 = vmatpush2.bf16.msra.mxu0 %v2113
    %2316 = vmatprep.subr.bf16.mxu0 0
    %2317 = vmatpush2.bf16.msra.mxu0 %v2112
    %2318 = vmatprep.subr.bf16.mxu0 0
    %2319 = vmatpush2.bf16.msra.mxu0 %v2111
    %2320 = vmatprep.subr.bf16.mxu0 0
    %2321 = vmatpush2.bf16.msra.mxu0 %v2110
    %2322 = vmatprep.subr.bf16.mxu0 0
    %2323 = vmatpush2.bf16.msra.mxu0 %v2109
    %2324 = vmatprep.subr.bf16.mxu0 0
    %2325 = vmatpush2.bf16.msra.mxu0 %v2108
    %2326 = vmatprep.subr.bf16.mxu0 0
    %2327 = vmatpush2.bf16.msra.mxu0 %v2107
    %2328 = vmatprep.subr.bf16.mxu0 0
    %2329 = vmatpush2.bf16.msra.mxu0 %v2106
    %2330 = vmatprep.mubr.bf16.mxu0 %v1658
    %2331 = vmatmul.mubr.bf16.gmra.mxu0 %v1657
    %v2332 = vpop.f32.mrf.mxu0
    %v2333 = vadd.f32 %v2293, %v2332
    %v2334 = vpop.f32.mrf.mxu0
    %v2335 = vpop.f32.mrf.mxu0
    %v2336 = vpop.f32.mrf.mxu0
    %2337 = vdwg.mxu0
    %v2338 = vtanh.pop %v2333
    %v2339 = vpack.c.bf16 %v2338, %v2338
    %v2340 = vld [vmem:[%s5] sm:$0xf]
    %v2341 = vld [vmem:[%s5 + $0x4] sm:$0xf]
    %v2342 = vld [vmem:[%s5 + $0x8] sm:$0xf]
    %v2343 = vld [vmem:[%s5 + $0xc] sm:$0xf]
    %v2344 = vld [vmem:[%s5 + $0x10] sm:$0xf]
    %v2345 = vld [vmem:[%s5 + $0x14] sm:$0xf]
    %v2346 = vld [vmem:[%s5 + $0x18] sm:$0xf]
    %v2347 = vld [vmem:[%s5 + $0x1c] sm:$0xf]
    %v2348 = vld [vmem:[%s5 + $0x20] sm:$0xf]
    %v2349 = vld [vmem:[%s5 + $0x24] sm:$0xf]
    %v2350 = vld [vmem:[%s5 + $0x28] sm:$0xf]
    %v2351 = vld [vmem:[%s5 + $0x2c] sm:$0xf]
    %v2352 = vld [vmem:[%s5 + $0x30] sm:$0xf]
    %v2353 = vld [vmem:[%s5 + $0x34] sm:$0xf]
    %v2354 = vld [vmem:[%s5 + $0x38] sm:$0xf]
    %v2355 = vld [vmem:[%s5 + $0x3c] sm:$0xf]
    %v2356 = vld [vmem:[%s6] sm:$0x1]
    %v2358 = vlaneseq
    %v2359 = vshrl.u32 %v2358, 7
    %v2360 = vsub.s32 0, %v2359
    %v2361 = vrot.slane %v2356, %v2360
    %v2379 = vunpack.c.l.b16 %v2340
    %v2380 = vunpack.c.l.b16 %v2341
    %v2381 = vunpack.c.l.b16 %v2342
    %v2382 = vunpack.c.l.b16 %v2343
    %v2383 = vunpack.c.l.b16 %v2344
    %v2384 = vunpack.c.l.b16 %v2345
    %v2385 = vunpack.c.l.b16 %v2346
    %v2386 = vunpack.c.l.b16 %v2347
    %v2387 = vunpack.c.l.b16 %v2348
    %v2388 = vunpack.c.l.b16 %v2349
    %v2389 = vunpack.c.l.b16 %v2350
    %v2390 = vunpack.c.l.b16 %v2351
    %v2391 = vunpack.c.l.b16 %v2352
    %v2392 = vunpack.c.l.b16 %v2353
    %v2393 = vunpack.c.l.b16 %v2354
    %v2394 = vunpack.c.l.b16 %v2355
    %v2395 = vpack.c.b16 %v2380, %v2379
    %v2396 = vpack.c.b16 %v2382, %v2381
    %v2397 = vpack.c.b16 %v2384, %v2383
    %v2398 = vpack.c.b16 %v2386, %v2385
    %v2399 = vpack.c.b16 %v2388, %v2387
    %v2400 = vpack.c.b16 %v2390, %v2389
    %v2401 = vpack.c.b16 %v2392, %v2391
    %v2402 = vpack.c.b16 %v2394, %v2393
    %2411 = vmatprep.subr.bf16.mxu0 0
    %2412 = vmatpush1.bf16.msra.mxu0 %v2402
    %2413 = vmatprep.subr.bf16.mxu0 0
    %2414 = vmatpush1.bf16.msra.mxu0 %v2401
    %2415 = vmatprep.subr.bf16.mxu0 0
    %2416 = vmatpush1.bf16.msra.mxu0 %v2400
    %2417 = vmatprep.subr.bf16.mxu0 0
    %2418 = vmatpush1.bf16.msra.mxu0 %v2399
    %2419 = vmatprep.subr.bf16.mxu0 0
    %2420 = vmatpush1.bf16.msra.mxu0 %v2398
    %2421 = vmatprep.subr.bf16.mxu0 0
    %2422 = vmatpush1.bf16.msra.mxu0 %v2397
    %2423 = vmatprep.subr.bf16.mxu0 0
    %2424 = vmatpush1.bf16.msra.mxu0 %v2396
    %2425 = vmatprep.subr.bf16.mxu0 0
    %2426 = vmatpush1.bf16.msra.mxu0 %v2395
    %2427 = vmatprep.subr.bf16.mxu0 0
    %2428 = vmatpush2.bf16.msra.mxu0 0
    %2429 = vmatprep.subr.bf16.mxu0 0
    %2430 = vmatpush2.bf16.msra.mxu0 0
    %2431 = vmatprep.subr.bf16.mxu0 0
    %2432 = vmatpush2.bf16.msra.mxu0 0
    %2433 = vmatprep.subr.bf16.mxu0 0
    %2434 = vmatpush2.bf16.msra.mxu0 0
    %2435 = vmatprep.subr.bf16.mxu0 0
    %2436 = vmatpush2.bf16.msra.mxu0 0
    %2437 = vmatprep.subr.bf16.mxu0 0
    %2438 = vmatpush2.bf16.msra.mxu0 0
    %2439 = vmatprep.subr.bf16.mxu0 0
    %2440 = vmatpush2.bf16.msra.mxu0 0
    %2441 = vmatprep.subr.bf16.mxu0 0
    %2442 = vmatpush2.bf16.msra.mxu0 0
    %2443 = vmatprep.mubr.bf16.mxu0 0
    %2444 = vmatmul.mubr.bf16.gmra.mxu0 %v2339
    %v2445 = vpop.f32.mrf.mxu0
    %v2446 = vadd.f32 %v2361, %v2445
    %v2447 = vpop.f32.mrf.mxu0
    %v2448 = vpop.f32.mrf.mxu0
    %v2449 = vpop.f32.mrf.mxu0
    %2450 = vdwg.mxu0
    %v2451 = vtanh.pop %v2446
    %v2452 = vpack.c.bf16 %v2451, %v2451
    %v2453 = vld [vmem:[%s7] sm:$0xf]
    %v2454 = vld [vmem:[%s7 + $0x4] sm:$0xf]
    %v2455 = vld [vmem:[%s7 + $0x8] sm:$0xf]
    %v2456 = vld [vmem:[%s7 + $0xc] sm:$0xf]
    %v2457 = vld [vmem:[%s7 + $0x10] sm:$0xf]
    %v2458 = vld [vmem:[%s7 + $0x14] sm:$0xf]
    %v2459 = vld [vmem:[%s7 + $0x18] sm:$0xf]
    %v2460 = vld [vmem:[%s7 + $0x1c] sm:$0xf]
    %v2461 = vld [vmem:[%s7 + $0x20] sm:$0xf]
    %v2462 = vld [vmem:[%s7 + $0x24] sm:$0xf]
    %v2463 = vld [vmem:[%s7 + $0x28] sm:$0xf]
    %v2464 = vld [vmem:[%s7 + $0x2c] sm:$0xf]
    %v2465 = vld [vmem:[%s7 + $0x30] sm:$0xf]
    %v2466 = vld [vmem:[%s7 + $0x34] sm:$0xf]
    %v2467 = vld [vmem:[%s7 + $0x38] sm:$0xf]
    %v2468 = vld [vmem:[%s7 + $0x3c] sm:$0xf]
    %v2469 = vld [vmem:[%s8] sm:$0x1]
    %v2471 = vlaneseq
    %v2472 = vshrl.u32 %v2471, 7
    %v2473 = vsub.s32 0, %v2472
    %v2474 = vrot.slane %v2469, %v2473
    %v2492 = vunpack.c.l.b16 %v2453
    %v2493 = vunpack.c.l.b16 %v2454
    %v2494 = vunpack.c.l.b16 %v2455
    %v2495 = vunpack.c.l.b16 %v2456
    %v2496 = vunpack.c.l.b16 %v2457
    %v2497 = vunpack.c.l.b16 %v2458
    %v2498 = vunpack.c.l.b16 %v2459
    %v2499 = vunpack.c.l.b16 %v2460
    %v2500 = vunpack.c.l.b16 %v2461
    %v2501 = vunpack.c.l.b16 %v2462
    %v2502 = vunpack.c.l.b16 %v2463
    %v2503 = vunpack.c.l.b16 %v2464
    %v2504 = vunpack.c.l.b16 %v2465
    %v2505 = vunpack.c.l.b16 %v2466
    %v2506 = vunpack.c.l.b16 %v2467
    %v2507 = vunpack.c.l.b16 %v2468
    %v2508 = vpack.c.b16 %v2493, %v2492
    %v2509 = vpack.c.b16 %v2495, %v2494
    %v2510 = vpack.c.b16 %v2497, %v2496
    %v2511 = vpack.c.b16 %v2499, %v2498
    %v2512 = vpack.c.b16 %v2501, %v2500
    %v2513 = vpack.c.b16 %v2503, %v2502
    %v2514 = vpack.c.b16 %v2505, %v2504
    %v2515 = vpack.c.b16 %v2507, %v2506
    %2524 = vmatprep.subr.bf16.mxu0 0
    %2525 = vmatpush1.bf16.msra.mxu0 %v2515
    %2526 = vmatprep.subr.bf16.mxu0 0
    %2527 = vmatpush1.bf16.msra.mxu0 %v2514
    %2528 = vmatprep.subr.bf16.mxu0 0
    %2529 = vmatpush1.bf16.msra.mxu0 %v2513
    %2530 = vmatprep.subr.bf16.mxu0 0
    %2531 = vmatpush1.bf16.msra.mxu0 %v2512
    %2532 = vmatprep.subr.bf16.mxu0 0
    %2533 = vmatpush1.bf16.msra.mxu0 %v2511
    %2534 = vmatprep.subr.bf16.mxu0 0
    %2535 = vmatpush1.bf16.msra.mxu0 %v2510
    %2536 = vmatprep.subr.bf16.mxu0 0
    %2537 = vmatpush1.bf16.msra.mxu0 %v2509
    %2538 = vmatprep.subr.bf16.mxu0 0
    %2539 = vmatpush1.bf16.msra.mxu0 %v2508
    %2540 = vmatprep.subr.bf16.mxu0 0
    %2541 = vmatpush2.bf16.msra.mxu0 0
    %2542 = vmatprep.subr.bf16.mxu0 0
    %2543 = vmatpush2.bf16.msra.mxu0 0
    %2544 = vmatprep.subr.bf16.mxu0 0
    %2545 = vmatpush2.bf16.msra.mxu0 0
    %2546 = vmatprep.subr.bf16.mxu0 0
    %2547 = vmatpush2.bf16.msra.mxu0 0
    %2548 = vmatprep.subr.bf16.mxu0 0
    %2549 = vmatpush2.bf16.msra.mxu0 0
    %2550 = vmatprep.subr.bf16.mxu0 0
    %2551 = vmatpush2.bf16.msra.mxu0 0
    %2552 = vmatprep.subr.bf16.mxu0 0
    %2553 = vmatpush2.bf16.msra.mxu0 0
    %2554 = vmatprep.subr.bf16.mxu0 0
    %2555 = vmatpush2.bf16.msra.mxu0 0
    %2556 = vmatprep.mubr.bf16.mxu0 0
    %2557 = vmatmul.mubr.bf16.gmra.mxu0 %v2452
    %v2558 = vpop.f32.mrf.mxu0
    %v2559 = vadd.f32 %v2474, %v2558
    %v2560 = vpop.f32.mrf.mxu0
    %v2561 = vpop.f32.mrf.mxu0
    %v2562 = vpop.f32.mrf.mxu0
    %2563 = vdwg.mxu0
    %2564 = vst [vmem:[%s9] sm:$0xff] %v2559
    // Predicated region
    $region46: #{minatar_policy_forward.1} parent=1 // pred_check
      _
    $region47: #{minatar_policy_forward.1} parent=1 // pred_check_branch
      %2566 = sbr.rel (0) target = $region49
    $region48: #{minatar_policy_forward.1} parent=1 // pred_region
      _
    $region49: #{minatar_policy_forward.1} parent=1 // pred_fallthru
      _
    // Predicated region
    $region50: #{minatar_policy_forward.1} parent=1 // pred_check
      _
    $region51: #{minatar_policy_forward.1} parent=1 // pred_check_branch
      %2568 = sbr.rel (0) target = $region53
    $region52: #{minatar_policy_forward.1} parent=1 // pred_region
      _
    $region53: #{minatar_policy_forward.1} parent=1 // pred_fallthru
      _
    %2569 = vsyncpa [#allocation3], 1
    %2570 = vsyncpa [#allocation5], 1

</llo_original>
